<compile_context>
chip_gen: v7x
topology: tpu7x:2x2x1
jax: 0.10.0
libtpu: 0.0.40
codegen_flags: <defaults>
</compile_context>

<pallas_src>
import functools

import jax
import jax.numpy as jnp
from jax.experimental import pallas as pl
from jax.experimental.pallas import tpu as pltpu

HIDDEN = 20
CHUNK = 256  # lanes per interleaved chain (2 x 128, lane-dense)


def _pinn_kernel(x_ref, w_ref, b_ref, o_ref, *,
                 num_hidden_layers, n_sub, use_bf16_hidden):
    """Transposed-layout PINN forward.

    x_ref : (1, tile_n)              batch on the lane axis
    w_ref : (l+2, HIDDEN, HIDDEN)    packed weight slab, (out, in) per layer
    b_ref : (l+2, HIDDEN, 1)         packed bias slab (column vectors)
    o_ref : (1, tile_n)
    """
    l = num_hidden_layers

    # Layer 0 weight is a (20, 1) column; last-layer weight is a (1, 20) row.
    w0 = w_ref[0][:, 0:1]                    # (HIDDEN, 1)
    b0 = b_ref[0]                            # (HIDDEN, 1)
    wo = w_ref[l + 1][0:1, :]                # (1, HIDDEN)
    bo = b_ref[l + 1][0:1, :]                # (1, 1)

    h_dtype = jnp.bfloat16 if use_bf16_hidden else jnp.float32
    # Hoist hidden weight/bias loads (and optional bf16 cast) out of the
    # sub-chunk loop so they are not re-materialized per iteration.
    wh = [w_ref[i + 1].astype(h_dtype) for i in range(l)]
    bh = [b_ref[i + 1] for i in range(l)]

    for s in range(n_sub):
        base = s * 2 * CHUNK
        xa = x_ref[:, base:base + CHUNK]                 # (1, CHUNK)
        xb = x_ref[:, base + CHUNK:base + 2 * CHUNK]

        # First layer is a K=1 contraction -> pure VPU broadcast multiply-add
        # (outer product), no degenerate MXU round trip. Kept in f32.
        ha = jnp.tanh(w0 * xa + b0).astype(h_dtype)      # (HIDDEN, CHUNK)
        hb = jnp.tanh(w0 * xb + b0).astype(h_dtype)

        # Hidden layers: lane-dense (20,20) @ (20,CHUNK) MXU matmuls with f32
        # accumulation. The two chains are independent, so the scheduler
        # overlaps one chain's tanh (EUP) with the other's matmul (MXU).
        for i in range(l):
            za = jnp.dot(wh[i], ha, preferred_element_type=jnp.float32)
            zb = jnp.dot(wh[i], hb, preferred_element_type=jnp.float32)
            ha = jnp.tanh((za + bh[i]).astype(h_dtype))
            hb = jnp.tanh((zb + bh[i]).astype(h_dtype))

        # Output layer in f32: (1,20)@(20,CHUNK) -> lane-dense (1,CHUNK) rows.
        oa = jnp.dot(wo, ha.astype(jnp.float32),
                     preferred_element_type=jnp.float32) + bo
        ob = jnp.dot(wo, hb.astype(jnp.float32),
                     preferred_element_type=jnp.float32) + bo

        # Store the two halves directly (no concatenate temporary); both
        # stores are unmasked lane-dense (256-lane) stores.
        o_ref[:, base:base + CHUNK] = oa.astype(o_ref.dtype)
        o_ref[:, base + CHUNK:base + 2 * CHUNK] = ob.astype(o_ref.dtype)


def pack_params(params):
    """Pack the 2(l+2) torch-layout tensors into two VMEM-resident slabs.

    Call ONCE at init / after each optimizer step, not per forward call.
    """
    l = int(params["wh"].shape[0])
    w_slab = jnp.zeros((l + 2, HIDDEN, HIDDEN), jnp.float32)
    b_slab = jnp.zeros((l + 2, HIDDEN, 1), jnp.float32)

    # Layer 0: Linear(1, 20) -> weight column (20, 1), bias column (20, 1).
    w_slab = w_slab.at[0, :, 0].set(params["w0"][:, 0])
    b_slab = b_slab.at[0, :, 0].set(params["b0"])
    # Hidden layers: Linear(20, 20) weights already (out, in).
    if l > 0:
        w_slab = w_slab.at[1:l + 1].set(params["wh"])
        b_slab = b_slab.at[1:l + 1, :, 0].set(params["bh"])
    # Output layer: Linear(20, 1) -> weight row (1, 20), scalar bias.
    w_slab = w_slab.at[l + 1, 0, :].set(params["wo"][0])
    b_slab = b_slab.at[l + 1, 0, 0].set(params["bo"][0])
    return w_slab, b_slab


@functools.partial(jax.jit, static_argnames=("tile_n", "use_bf16_hidden"))
def pinn_forward(x, w_slab, b_slab, *, tile_n=1024, use_bf16_hidden=False):
    """x: (N, 1) float32. w_slab/b_slab: packed slabs from pack_params.

    The whole forward (transpose in, kernel, transpose out) is one jit, so the
    only HBM traffic outside the kernel is the trivial (N,1)<->(1,N) reshapes.
    For large N (>= 1e5) raise tile_n (8K-32K); the in-kernel sub-chunk loop
    keeps vreg pressure constant while amortizing per-grid-step overhead.
    """
    N, one = x.shape
    assert one == 1
    assert tile_n % (2 * CHUNK) == 0, "tile_n must be a multiple of 512"

    l = int(w_slab.shape[0]) - 2

    xt = x.T                                           # (1, N), batch on lanes
    n_tiles = pl.cdiv(N, tile_n)                       # partial last block OK

    kernel = functools.partial(
        _pinn_kernel,
        num_hidden_layers=l,
        n_sub=tile_n // (2 * CHUNK),
        use_bf16_hidden=use_bf16_hidden,
    )

    out_t = pl.pallas_call(
        kernel,
        out_shape=jax.ShapeDtypeStruct((1, N), jnp.float32),
        grid_spec=pltpu.PrefetchScalarGridSpec(
            num_scalar_prefetch=0,
            grid=(n_tiles,),
            in_specs=[
                pl.BlockSpec((1, tile_n), lambda i: (0, i)),                 # x tile
                pl.BlockSpec((l + 2, HIDDEN, HIDDEN), lambda i: (0, 0, 0)),  # weights (resident)
                pl.BlockSpec((l + 2, HIDDEN, 1), lambda i: (0, 0, 0)),       # biases (resident)
            ],
            out_specs=pl.BlockSpec((1, tile_n), lambda i: (0, i)),
        ),
        compiler_params=pltpu.CompilerParams(
            dimension_semantics=("parallel",)),
    )(xt, w_slab, b_slab)

    return out_t.T                                     # back to (N, 1)


def init_pinn_params(key, l):
    """Deterministic init mirroring torch.nn.Linear (weights are (out, in))."""
    keys = jax.random.split(key, 2 * (l + 2))

    def uniform(k, shape, fan_in):
        bound = 1.0 / jnp.sqrt(jnp.float32(fan_in))
        return jax.random.uniform(k, shape, jnp.float32, -bound, bound)

    w0 = uniform(keys[0], (HIDDEN, 1), 1)              # Linear(1, 20).weight
    b0 = uniform(keys[1], (HIDDEN,), 1)

    wh_list, bh_list = [], []
    for i in range(l):
        wh_list.append(uniform(keys[2 + 2 * i], (HIDDEN, HIDDEN), HIDDEN))
        bh_list.append(uniform(keys[3 + 2 * i], (HIDDEN,), HIDDEN))
    if l > 0:
        wh = jnp.stack(wh_list, axis=0)                # (l, 20, 20)
        bh = jnp.stack(bh_list, axis=0)                # (l, 20)
    else:
        wh = jnp.zeros((0, HIDDEN, HIDDEN), jnp.float32)
        bh = jnp.zeros((0, HIDDEN), jnp.float32)

    wo = uniform(keys[2 + 2 * l], (1, HIDDEN), HIDDEN)  # Linear(20, 1).weight
    bo = uniform(keys[3 + 2 * l], (1,), HIDDEN)

    return {"w0": w0, "b0": b0, "wh": wh, "bh": bh, "wo": wo, "bo": bo}


def pinn_reference(x, params):
    """Pure-JAX reference of the same forward pass (torch semantics)."""
    h = jnp.tanh(x @ params["w0"].T + params["b0"])
    for i in range(params["wh"].shape[0]):
        h = jnp.tanh(h @ params["wh"][i].T + params["bh"][i])
    return h @ params["wo"].T + params["bo"]


if __name__ == "__main__":
    key = jax.random.PRNGKey(0)
    k_param, k_x = jax.random.split(key)

    l = 3          # number of hidden (20 -> 20) layers, as in PINN(l)
    N = 2048       # 2 tiles -> even split across v7x's two TensorCores
    tile_n = 1024

    params = init_pinn_params(k_param, l)
    w_slab, b_slab = pack_params(params)      # packed once, outside the fwd
    x = jax.random.uniform(k_x, (N, 1), jnp.float32, minval=-1.0, maxval=1.0)

    # Default f32 path (all generations).
    out = pinn_forward(x, w_slab, b_slab, tile_n=tile_n)
    out = jax.block_until_ready(out)

    ref = pinn_reference(x, params)
    assert out.shape == (N, 1)
    assert jnp.allclose(out, ref, atol=1e-4, rtol=1e-4), "mismatch vs reference"

    # Optional bf16 hidden path (tanh/EUP win on v6e/v7x); f32 accumulation,
    # layer 0 and output layer kept in f32, so only a loose tolerance applies.
    out_bf16 = jax.block_until_ready(
        pinn_forward(x, w_slab, b_slab, tile_n=tile_n, use_bf16_hidden=True))
    assert out_bf16.shape == (N, 1)
    assert jnp.allclose(out_bf16, ref, atol=5e-2, rtol=5e-2), "bf16 path diverged"

    print("KERNEL_OK")
</pallas_src>

<mosaic_0001>
module attributes {stable_mosaic.version = 11 : i64} {
  func.func @_pinn_kernel(%arg0: i32, %arg1: memref<1x1024xf32, #tpu.memory_space<vmem>>, %arg2: memref<5x20x20xf32, #tpu.memory_space<vmem>>, %arg3: memref<5x20x1xf32, #tpu.memory_space<vmem>>, %arg4: memref<1x1024xf32, #tpu.memory_space<vmem>>) attributes {dimension_semantics = [#tpu.dimension_semantics<parallel>], iteration_bounds = array<i64: 2>, scalar_prefetch = 0 : i64, scratch_operands = 0 : i64, tpu.core_type = #tpu.core_type<tc>, window_params = [{transform_indices = @transform_0, window_bounds = array<i64: 1, 1024>}, {pipeline_mode = #tpu.pipeline_mode<synchronous>, transform_indices = @transform_1, window_bounds = array<i64: 5, 20, 20>}, {pipeline_mode = #tpu.pipeline_mode<synchronous>, transform_indices = @transform_2, window_bounds = array<i64: 5, 20, 1>}, {transform_indices = @transform_3, window_bounds = array<i64: 1, 1024>}]} {
    %c0 = arith.constant 0 : index
    %c0_0 = arith.constant 0 : index
    %c0_1 = arith.constant 0 : index
    %0 = vector.load %arg2[%c0, %c0_0, %c0_1] : memref<5x20x20xf32, #tpu.memory_space<vmem>>, vector<1x20x20xf32>
    %1 = vector.shape_cast %0 : vector<1x20x20xf32> to vector<20x20xf32>
    %2 = vector.extract_strided_slice %1 {offsets = [0, 0], sizes = [20, 1], strides = [1, 1]} : vector<20x20xf32> to vector<20x1xf32>
    %c0_2 = arith.constant 0 : index
    %c0_3 = arith.constant 0 : index
    %c0_4 = arith.constant 0 : index
    %3 = vector.load %arg3[%c0_2, %c0_3, %c0_4] : memref<5x20x1xf32, #tpu.memory_space<vmem>>, vector<1x20x1xf32>
    %4 = vector.shape_cast %3 : vector<1x20x1xf32> to vector<20x1xf32>
    %c4 = arith.constant 4 : index
    %c0_5 = arith.constant 0 : index
    %c0_6 = arith.constant 0 : index
    %5 = vector.load %arg2[%c4, %c0_5, %c0_6] : memref<5x20x20xf32, #tpu.memory_space<vmem>>, vector<1x20x20xf32>
    %6 = vector.shape_cast %5 : vector<1x20x20xf32> to vector<20x20xf32>
    %7 = vector.extract_strided_slice %6 {offsets = [0, 0], sizes = [1, 20], strides = [1, 1]} : vector<20x20xf32> to vector<1x20xf32>
    %c4_7 = arith.constant 4 : index
    %c0_8 = arith.constant 0 : index
    %c0_9 = arith.constant 0 : index
    %8 = vector.load %arg3[%c4_7, %c0_8, %c0_9] : memref<5x20x1xf32, #tpu.memory_space<vmem>>, vector<1x20x1xf32>
    %9 = vector.shape_cast %8 : vector<1x20x1xf32> to vector<20x1xf32>
    %10 = vector.extract_strided_slice %9 {offsets = [0, 0], sizes = [1, 1], strides = [1, 1]} : vector<20x1xf32> to vector<1x1xf32>
    %c1 = arith.constant 1 : index
    %c0_10 = arith.constant 0 : index
    %c0_11 = arith.constant 0 : index
    %11 = vector.load %arg2[%c1, %c0_10, %c0_11] : memref<5x20x20xf32, #tpu.memory_space<vmem>>, vector<1x20x20xf32>
    %12 = vector.shape_cast %11 : vector<1x20x20xf32> to vector<20x20xf32>
    %c2 = arith.constant 2 : index
    %c0_12 = arith.constant 0 : index
    %c0_13 = arith.constant 0 : index
    %13 = vector.load %arg2[%c2, %c0_12, %c0_13] : memref<5x20x20xf32, #tpu.memory_space<vmem>>, vector<1x20x20xf32>
    %14 = vector.shape_cast %13 : vector<1x20x20xf32> to vector<20x20xf32>
    %c3 = arith.constant 3 : index
    %c0_14 = arith.constant 0 : index
    %c0_15 = arith.constant 0 : index
    %15 = vector.load %arg2[%c3, %c0_14, %c0_15] : memref<5x20x20xf32, #tpu.memory_space<vmem>>, vector<1x20x20xf32>
    %16 = vector.shape_cast %15 : vector<1x20x20xf32> to vector<20x20xf32>
    %c1_16 = arith.constant 1 : index
    %c0_17 = arith.constant 0 : index
    %c0_18 = arith.constant 0 : index
    %17 = vector.load %arg3[%c1_16, %c0_17, %c0_18] : memref<5x20x1xf32, #tpu.memory_space<vmem>>, vector<1x20x1xf32>
    %18 = vector.shape_cast %17 : vector<1x20x1xf32> to vector<20x1xf32>
    %c2_19 = arith.constant 2 : index
    %c0_20 = arith.constant 0 : index
    %c0_21 = arith.constant 0 : index
    %19 = vector.load %arg3[%c2_19, %c0_20, %c0_21] : memref<5x20x1xf32, #tpu.memory_space<vmem>>, vector<1x20x1xf32>
    %20 = vector.shape_cast %19 : vector<1x20x1xf32> to vector<20x1xf32>
    %c3_22 = arith.constant 3 : index
    %c0_23 = arith.constant 0 : index
    %c0_24 = arith.constant 0 : index
    %21 = vector.load %arg3[%c3_22, %c0_23, %c0_24] : memref<5x20x1xf32, #tpu.memory_space<vmem>>, vector<1x20x1xf32>
    %22 = vector.shape_cast %21 : vector<1x20x1xf32> to vector<20x1xf32>
    %c0_25 = arith.constant 0 : index
    %c0_26 = arith.constant 0 : index
    %23 = vector.load %arg1[%c0_25, %c0_26] : memref<1x1024xf32, #tpu.memory_space<vmem>>, vector<1x256xf32>
    %c0_27 = arith.constant 0 : index
    %c256 = arith.constant 256 : index
    %24 = vector.load %arg1[%c0_27, %c256] : memref<1x1024xf32, #tpu.memory_space<vmem>>, vector<1x256xf32>
    %25 = vector.broadcast %2 : vector<20x1xf32> to vector<20x256xf32>
    %26 = vector.broadcast %23 : vector<1x256xf32> to vector<20x256xf32>
    %27 = arith.mulf %25, %26 : vector<20x256xf32>
    %28 = vector.broadcast %4 : vector<20x1xf32> to vector<20x256xf32>
    %29 = arith.addf %27, %28 : vector<20x256xf32>
    %30 = math.tanh %29 : vector<20x256xf32>
    %31 = vector.broadcast %2 : vector<20x1xf32> to vector<20x256xf32>
    %32 = vector.broadcast %24 : vector<1x256xf32> to vector<20x256xf32>
    %33 = arith.mulf %31, %32 : vector<20x256xf32>
    %34 = vector.broadcast %4 : vector<20x1xf32> to vector<20x256xf32>
    %35 = arith.addf %33, %34 : vector<20x256xf32>
    %36 = math.tanh %35 : vector<20x256xf32>
    %cst = arith.constant dense<0.000000e+00> : vector<20x256xf32>
    %37 = tpu.matmul %12, %30, %cst {dimension_numbers = #tpu.dot_dimension_numbers<[1], [0], [0], [1], [0, 0, 1, 1], [], []>} : vector<20x20xf32>, vector<20x256xf32>, vector<20x256xf32> -> vector<20x256xf32>
    %cst_28 = arith.constant dense<0.000000e+00> : vector<20x256xf32>
    %38 = tpu.matmul %12, %36, %cst_28 {dimension_numbers = #tpu.dot_dimension_numbers<[1], [0], [0], [1], [0, 0, 1, 1], [], []>} : vector<20x20xf32>, vector<20x256xf32>, vector<20x256xf32> -> vector<20x256xf32>
    %39 = vector.broadcast %18 : vector<20x1xf32> to vector<20x256xf32>
    %40 = arith.addf %37, %39 : vector<20x256xf32>
    %41 = math.tanh %40 : vector<20x256xf32>
    %42 = vector.broadcast %18 : vector<20x1xf32> to vector<20x256xf32>
    %43 = arith.addf %38, %42 : vector<20x256xf32>
    %44 = math.tanh %43 : vector<20x256xf32>
    %cst_29 = arith.constant dense<0.000000e+00> : vector<20x256xf32>
    %45 = tpu.matmul %14, %41, %cst_29 {dimension_numbers = #tpu.dot_dimension_numbers<[1], [0], [0], [1], [0, 0, 1, 1], [], []>} : vector<20x20xf32>, vector<20x256xf32>, vector<20x256xf32> -> vector<20x256xf32>
    %cst_30 = arith.constant dense<0.000000e+00> : vector<20x256xf32>
    %46 = tpu.matmul %14, %44, %cst_30 {dimension_numbers = #tpu.dot_dimension_numbers<[1], [0], [0], [1], [0, 0, 1, 1], [], []>} : vector<20x20xf32>, vector<20x256xf32>, vector<20x256xf32> -> vector<20x256xf32>
    %47 = vector.broadcast %20 : vector<20x1xf32> to vector<20x256xf32>
    %48 = arith.addf %45, %47 : vector<20x256xf32>
    %49 = math.tanh %48 : vector<20x256xf32>
    %50 = vector.broadcast %20 : vector<20x1xf32> to vector<20x256xf32>
    %51 = arith.addf %46, %50 : vector<20x256xf32>
    %52 = math.tanh %51 : vector<20x256xf32>
    %cst_31 = arith.constant dense<0.000000e+00> : vector<20x256xf32>
    %53 = tpu.matmul %16, %49, %cst_31 {dimension_numbers = #tpu.dot_dimension_numbers<[1], [0], [0], [1], [0, 0, 1, 1], [], []>} : vector<20x20xf32>, vector<20x256xf32>, vector<20x256xf32> -> vector<20x256xf32>
    %cst_32 = arith.constant dense<0.000000e+00> : vector<20x256xf32>
    %54 = tpu.matmul %16, %52, %cst_32 {dimension_numbers = #tpu.dot_dimension_numbers<[1], [0], [0], [1], [0, 0, 1, 1], [], []>} : vector<20x20xf32>, vector<20x256xf32>, vector<20x256xf32> -> vector<20x256xf32>
    %55 = vector.broadcast %22 : vector<20x1xf32> to vector<20x256xf32>
    %56 = arith.addf %53, %55 : vector<20x256xf32>
    %57 = math.tanh %56 : vector<20x256xf32>
    %58 = vector.broadcast %22 : vector<20x1xf32> to vector<20x256xf32>
    %59 = arith.addf %54, %58 : vector<20x256xf32>
    %60 = math.tanh %59 : vector<20x256xf32>
    %cst_33 = arith.constant dense<0.000000e+00> : vector<1x256xf32>
    %61 = tpu.matmul %7, %57, %cst_33 {dimension_numbers = #tpu.dot_dimension_numbers<[1], [0], [0], [1], [0, 0, 1, 1], [], []>} : vector<1x20xf32>, vector<20x256xf32>, vector<1x256xf32> -> vector<1x256xf32>
    %62 = vector.broadcast %10 : vector<1x1xf32> to vector<1x256xf32>
    %63 = arith.addf %61, %62 : vector<1x256xf32>
    %cst_34 = arith.constant dense<0.000000e+00> : vector<1x256xf32>
    %64 = tpu.matmul %7, %60, %cst_34 {dimension_numbers = #tpu.dot_dimension_numbers<[1], [0], [0], [1], [0, 0, 1, 1], [], []>} : vector<1x20xf32>, vector<20x256xf32>, vector<1x256xf32> -> vector<1x256xf32>
    %65 = vector.broadcast %10 : vector<1x1xf32> to vector<1x256xf32>
    %66 = arith.addf %64, %65 : vector<1x256xf32>
    %c0_35 = arith.constant 0 : index
    %c0_36 = arith.constant 0 : index
    %67 = vector.load %arg4[%c0_35, %c0_36] : memref<1x1024xf32, #tpu.memory_space<vmem>>, vector<1x256xf32>
    tpu.vector_store %arg4[%c0_35, %c0_36], %63 {strides = array<i32>} : memref<1x1024xf32, #tpu.memory_space<vmem>>, vector<1x256xf32>,
    %c0_37 = arith.constant 0 : index
    %c256_38 = arith.constant 256 : index
    %68 = vector.load %arg4[%c0_37, %c256_38] : memref<1x1024xf32, #tpu.memory_space<vmem>>, vector<1x256xf32>
    tpu.vector_store %arg4[%c0_37, %c256_38], %66 {strides = array<i32>} : memref<1x1024xf32, #tpu.memory_space<vmem>>, vector<1x256xf32>,
    %c0_39 = arith.constant 0 : index
    %c512 = arith.constant 512 : index
    %69 = vector.load %arg1[%c0_39, %c512] : memref<1x1024xf32, #tpu.memory_space<vmem>>, vector<1x256xf32>
    %c0_40 = arith.constant 0 : index
    %c768 = arith.constant 768 : index
    %70 = vector.load %arg1[%c0_40, %c768] : memref<1x1024xf32, #tpu.memory_space<vmem>>, vector<1x256xf32>
    %71 = vector.broadcast %2 : vector<20x1xf32> to vector<20x256xf32>
    %72 = vector.broadcast %69 : vector<1x256xf32> to vector<20x256xf32>
    %73 = arith.mulf %71, %72 : vector<20x256xf32>
    %74 = vector.broadcast %4 : vector<20x1xf32> to vector<20x256xf32>
    %75 = arith.addf %73, %74 : vector<20x256xf32>
    %76 = math.tanh %75 : vector<20x256xf32>
    %77 = vector.broadcast %2 : vector<20x1xf32> to vector<20x256xf32>
    %78 = vector.broadcast %70 : vector<1x256xf32> to vector<20x256xf32>
    %79 = arith.mulf %77, %78 : vector<20x256xf32>
    %80 = vector.broadcast %4 : vector<20x1xf32> to vector<20x256xf32>
    %81 = arith.addf %79, %80 : vector<20x256xf32>
    %82 = math.tanh %81 : vector<20x256xf32>
    %cst_41 = arith.constant dense<0.000000e+00> : vector<20x256xf32>
    %83 = tpu.matmul %12, %76, %cst_41 {dimension_numbers = #tpu.dot_dimension_numbers<[1], [0], [0], [1], [0, 0, 1, 1], [], []>} : vector<20x20xf32>, vector<20x256xf32>, vector<20x256xf32> -> vector<20x256xf32>
    %cst_42 = arith.constant dense<0.000000e+00> : vector<20x256xf32>
    %84 = tpu.matmul %12, %82, %cst_42 {dimension_numbers = #tpu.dot_dimension_numbers<[1], [0], [0], [1], [0, 0, 1, 1], [], []>} : vector<20x20xf32>, vector<20x256xf32>, vector<20x256xf32> -> vector<20x256xf32>
    %85 = vector.broadcast %18 : vector<20x1xf32> to vector<20x256xf32>
    %86 = arith.addf %83, %85 : vector<20x256xf32>
    %87 = math.tanh %86 : vector<20x256xf32>
    %88 = vector.broadcast %18 : vector<20x1xf32> to vector<20x256xf32>
    %89 = arith.addf %84, %88 : vector<20x256xf32>
    %90 = math.tanh %89 : vector<20x256xf32>
    %cst_43 = arith.constant dense<0.000000e+00> : vector<20x256xf32>
    %91 = tpu.matmul %14, %87, %cst_43 {dimension_numbers = #tpu.dot_dimension_numbers<[1], [0], [0], [1], [0, 0, 1, 1], [], []>} : vector<20x20xf32>, vector<20x256xf32>, vector<20x256xf32> -> vector<20x256xf32>
    %cst_44 = arith.constant dense<0.000000e+00> : vector<20x256xf32>
    %92 = tpu.matmul %14, %90, %cst_44 {dimension_numbers = #tpu.dot_dimension_numbers<[1], [0], [0], [1], [0, 0, 1, 1], [], []>} : vector<20x20xf32>, vector<20x256xf32>, vector<20x256xf32> -> vector<20x256xf32>
    %93 = vector.broadcast %20 : vector<20x1xf32> to vector<20x256xf32>
    %94 = arith.addf %91, %93 : vector<20x256xf32>
    %95 = math.tanh %94 : vector<20x256xf32>
    %96 = vector.broadcast %20 : vector<20x1xf32> to vector<20x256xf32>
    %97 = arith.addf %92, %96 : vector<20x256xf32>
    %98 = math.tanh %97 : vector<20x256xf32>
    %cst_45 = arith.constant dense<0.000000e+00> : vector<20x256xf32>
    %99 = tpu.matmul %16, %95, %cst_45 {dimension_numbers = #tpu.dot_dimension_numbers<[1], [0], [0], [1], [0, 0, 1, 1], [], []>} : vector<20x20xf32>, vector<20x256xf32>, vector<20x256xf32> -> vector<20x256xf32>
    %cst_46 = arith.constant dense<0.000000e+00> : vector<20x256xf32>
    %100 = tpu.matmul %16, %98, %cst_46 {dimension_numbers = #tpu.dot_dimension_numbers<[1], [0], [0], [1], [0, 0, 1, 1], [], []>} : vector<20x20xf32>, vector<20x256xf32>, vector<20x256xf32> -> vector<20x256xf32>
    %101 = vector.broadcast %22 : vector<20x1xf32> to vector<20x256xf32>
    %102 = arith.addf %99, %101 : vector<20x256xf32>
    %103 = math.tanh %102 : vector<20x256xf32>
    %104 = vector.broadcast %22 : vector<20x1xf32> to vector<20x256xf32>
    %105 = arith.addf %100, %104 : vector<20x256xf32>
    %106 = math.tanh %105 : vector<20x256xf32>
    %cst_47 = arith.constant dense<0.000000e+00> : vector<1x256xf32>
    %107 = tpu.matmul %7, %103, %cst_47 {dimension_numbers = #tpu.dot_dimension_numbers<[1], [0], [0], [1], [0, 0, 1, 1], [], []>} : vector<1x20xf32>, vector<20x256xf32>, vector<1x256xf32> -> vector<1x256xf32>
    %108 = vector.broadcast %10 : vector<1x1xf32> to vector<1x256xf32>
    %109 = arith.addf %107, %108 : vector<1x256xf32>
    %cst_48 = arith.constant dense<0.000000e+00> : vector<1x256xf32>
    %110 = tpu.matmul %7, %106, %cst_48 {dimension_numbers = #tpu.dot_dimension_numbers<[1], [0], [0], [1], [0, 0, 1, 1], [], []>} : vector<1x20xf32>, vector<20x256xf32>, vector<1x256xf32> -> vector<1x256xf32>
    %111 = vector.broadcast %10 : vector<1x1xf32> to vector<1x256xf32>
    %112 = arith.addf %110, %111 : vector<1x256xf32>
    %c0_49 = arith.constant 0 : index
    %c512_50 = arith.constant 512 : index
    %113 = vector.load %arg4[%c0_49, %c512_50] : memref<1x1024xf32, #tpu.memory_space<vmem>>, vector<1x256xf32>
    tpu.vector_store %arg4[%c0_49, %c512_50], %109 {strides = array<i32>} : memref<1x1024xf32, #tpu.memory_space<vmem>>, vector<1x256xf32>,
    %c0_51 = arith.constant 0 : index
    %c768_52 = arith.constant 768 : index
    %114 = vector.load %arg4[%c0_51, %c768_52] : memref<1x1024xf32, #tpu.memory_space<vmem>>, vector<1x256xf32>
    tpu.vector_store %arg4[%c0_51, %c768_52], %112 {strides = array<i32>} : memref<1x1024xf32, #tpu.memory_space<vmem>>, vector<1x256xf32>,
    return
  }
  func.func @transform_0(%arg0: i32) -> (i32, i32) {
    %c0_i32 = arith.constant 0 : i32
    %c0_i32_0 = arith.constant 0 : i32
    return %c0_i32, %arg0 : i32, i32
  }
  func.func @transform_1(%arg0: i32) -> (i32, i32, i32) {
    %c0_i32 = arith.constant 0 : i32
    %c0_i32_0 = arith.constant 0 : i32
    %c0_i32_1 = arith.constant 0 : i32
    %c0_i32_2 = arith.constant 0 : i32
    return %c0_i32, %c0_i32_0, %c0_i32_1 : i32, i32, i32
  }
  func.func @transform_2(%arg0: i32) -> (i32, i32, i32) {
    %c0_i32 = arith.constant 0 : i32
    %c0_i32_0 = arith.constant 0 : i32
    %c0_i32_1 = arith.constant 0 : i32
    %c0_i32_2 = arith.constant 0 : i32
    return %c0_i32, %c0_i32_0, %c0_i32_1 : i32, i32, i32
  }
  func.func @transform_3(%arg0: i32) -> (i32, i32) {
    %c0_i32 = arith.constant 0 : i32
    %c0_i32_0 = arith.constant 0 : i32
    return %c0_i32, %arg0 : i32, i32
  }
}

</mosaic_0001>

<llo_original>
// kernel: pinn_forward.1
$region0: #{pinn_forward.1}
  #allocation0 [shape = 'u32[]', space=smem, size = 0x4, offset = 0x4, fixed_abs, tag = 'smem constant byte address 0x4 - core index']
  #allocation1 [shape = 'u32[144,128]{1,0:T(1,128)}', space=vmem, size = 0x12000, scoped, tag = 'internal scratch']
  %s0 = inlined_call_operand.hbm [shape: f32[1,2048], index: 0, kind: input, shape index: {}]
  %s1 = inlined_call_operand.vmem [shape: f32[5,20,20], index: 1, kind: input, shape index: {}]
  %s2 = inlined_call_operand.vmem [shape: f32[5,20,1], index: 2, kind: input, shape index: {}]
  %s3 = inlined_call_operand.hbm [shape: f32[1,2048], index: 3, kind: output, shape index: {}]
  %s4 = sld [smem:[#allocation0]]
  $region49: #{pinn_forward.1} parent=0
    _
  %s6 = ssub.s32 1, %s4
  %s7 = scalar_select 0, %s6, %s4
  $region1: #{pinn_forward.1} parent=0
    #allocation2 [shape = 'u8[8192]{0}', space=vmem, size = 0x2000, scoped, tag = 'input window, operand 0']
    #allocation3 [shape = 's32[2]{0}', space=sflag, size = 0x8, scoped, tag = 'scoped memory for pinn_forward.1']
    #allocation4 [shape = 's32[2]{0}', space=sflag, size = 0x8, scoped, tag = 'scoped memory for pinn_forward.1']
    #allocation5 [shape = 'u8[8192]{0}', space=vmem, size = 0x2000, scoped, tag = 'output window, operand 0']
    %8 = vsyncpa [#allocation3], 0
    %s9 = scalar_lea.sflag [#allocation3], 1
    %10 = vsyncpa %s9, 0
    %11 = vsyncpa [#allocation4], 0
    %s12 = scalar_lea.sflag [#allocation4], 1
    %13 = vsyncpa %s12, 0
    loop: start=0, step=1, limit=4
    $region2: #{pinn_forward.1} parent=1 // loop_pre_header
      _
    $region3: #{pinn_forward.1} parent=1 // loop_header
      %s15 = sphi 0, %s19
      %p16 = scmp.ge.s32.totalorder %s15, 4
      %s25 = sphi 0, %s27
      %s28 = sphi 0, %s25
      %s29 = sphi 0, %s28
      %s45 = sphi 0, %s29
      %s49 = sphi 0, %s49
      %s51 = sphi 0, %s49
      %s52 = sphi 0, %s51
      %s66 = sphi 0, %s52
      %s70 = sphi 0, %s70
      %s72 = sphi 0, %s70
      %s73 = sphi 0, %s72
      %s87 = sphi 0, %s73
      %s93 = sphi 0, %s95
      %s96 = sphi 0, %s93
      %s97 = sphi 0, %s96
      %s113 = sphi 0, %s97
    $region4: #{pinn_forward.1} parent=1 // loop_header_branch
      %18 = sbr.rel (%p16) target = $region8
    $region5: #{pinn_forward.1} parent=1 // loop_body
      %s20 = ssub.s32 %s15, 1
      %s21 = ssub.s32 %s15, 2
      %s22 = sadd.s32 %s15, 1
      %s23 = ssub.s32 %s15, %s22
      %p24 = scmp.eq.s32.totalorder %s23, 0
      %s26 = sadd.s32 %s25, 1
      %s27 = scalar_select %p24, %s25, %s26
      %p30 = pneg %p24
      %p31 = scmp.eq.s32.totalorder %s15, 1
      %p32 = por %p30, %p31
      %p33 = scmp.ne.s32.totalorder %s25, %s28
      %p34 = scmp.eq.s32.totalorder %s15, 0
      %p35 = por %p33, %p34
      %p36 = scmp.ne.s32.totalorder %s25, %s28
      %p37 = scmp.eq.s32.totalorder %s20, 1
      %p38 = por %p36, %p37
      %p39 = scmp.ne.s32.totalorder %s28, %s29
      %p40 = scmp.eq.s32.totalorder %s20, 0
      %p41 = por %p39, %p40
      %p42 = scmp.ne.s32.totalorder %s28, %s29
      %p43 = scmp.eq.s32.totalorder %s21, 1
      %p44 = por %p42, %p43
      %p46 = scmp.ne.s32.totalorder %s29, %s45
      %p47 = scmp.eq.s32.totalorder %s21, 0
      %p48 = por %p46, %p47
      %s50 = sadd.s32 %s49, 1
      %p53 = scmp.eq.s32.totalorder %s15, 1
      %p54 = scmp.ne.s32.totalorder %s49, %s51
      %p55 = scmp.eq.s32.totalorder %s15, 0
      %p56 = por %p54, %p55
      %p57 = scmp.ne.s32.totalorder %s49, %s51
      %p58 = scmp.eq.s32.totalorder %s20, 1
      %p59 = por %p57, %p58
      %p60 = scmp.ne.s32.totalorder %s51, %s52
      %p61 = scmp.eq.s32.totalorder %s20, 0
      %p62 = por %p60, %p61
      %p63 = scmp.ne.s32.totalorder %s51, %s52
      %p64 = scmp.eq.s32.totalorder %s21, 1
      %p65 = por %p63, %p64
      %p67 = scmp.ne.s32.totalorder %s52, %s66
      %p68 = scmp.eq.s32.totalorder %s21, 0
      %p69 = por %p67, %p68
      %s71 = sadd.s32 %s70, 1
      %p74 = scmp.eq.s32.totalorder %s15, 1
      %p75 = scmp.ne.s32.totalorder %s70, %s72
      %p76 = scmp.eq.s32.totalorder %s15, 0
      %p77 = por %p75, %p76
      %p78 = scmp.ne.s32.totalorder %s70, %s72
      %p79 = scmp.eq.s32.totalorder %s20, 1
      %p80 = por %p78, %p79
      %p81 = scmp.ne.s32.totalorder %s72, %s73
      %p82 = scmp.eq.s32.totalorder %s20, 0
      %p83 = por %p81, %p82
      %p84 = scmp.ne.s32.totalorder %s72, %s73
      %p85 = scmp.eq.s32.totalorder %s21, 1
      %p86 = por %p84, %p85
      %p88 = scmp.ne.s32.totalorder %s73, %s87
      %p89 = scmp.eq.s32.totalorder %s21, 0
      %p90 = por %p88, %p89
      %s91 = ssub.s32 %s15, %s22
      %p92 = scmp.eq.s32.totalorder %s91, 0
      %s94 = sadd.s32 %s93, 1
      %s95 = scalar_select %p92, %s93, %s94
      %p98 = pneg %p92
      %p99 = scmp.eq.s32.totalorder %s15, 1
      %p100 = por %p98, %p99
      %p101 = scmp.ne.s32.totalorder %s93, %s96
      %p102 = scmp.eq.s32.totalorder %s15, 0
      %p103 = por %p101, %p102
      %p104 = scmp.ne.s32.totalorder %s93, %s96
      %p105 = scmp.eq.s32.totalorder %s20, 1
      %p106 = por %p104, %p105
      %p107 = scmp.ne.s32.totalorder %s96, %s97
      %p108 = scmp.eq.s32.totalorder %s20, 0
      %p109 = por %p107, %p108
      %p110 = scmp.ne.s32.totalorder %s96, %s97
      %p111 = scmp.eq.s32.totalorder %s21, 1
      %p112 = por %p110, %p111
      %p114 = scmp.ne.s32.totalorder %s97, %s113
      %p115 = scmp.eq.s32.totalorder %s21, 0
      %p116 = por %p114, %p115
      %p117 = scmp.le.s32.totalorder 1, %s15
      %p118 = scmp.lt.s32.totalorder %s15, 3
      %p119 = pnand %p117, %p118
      %p120 = pneg %p119
      // Predicated region
      $region9: #{pinn_forward.1} parent=5 // pred_check
        _
      $region10: #{pinn_forward.1} parent=5 // pred_check_branch
        %122 = sbr.rel (%p119) target = $region12
      $region11: #{pinn_forward.1} parent=5 // pred_region
        %s123 = ssub.s32 %s15, 1
        // Predicated region
        $region13: #{pinn_forward.1} parent=11 // pred_check
          %p124 = pneg %p62
        $region14: #{pinn_forward.1} parent=11 // pred_check_branch
          %126 = sbr.rel (%p124) target = $region16
        $region15: #{pinn_forward.1} parent=11 // pred_region
          _
        $region16: #{pinn_forward.1} parent=11 // pred_fallthru
          _
        // Predicated region
        $region17: #{pinn_forward.1} parent=11 // pred_check
          %p127 = pneg %p83
        $region18: #{pinn_forward.1} parent=11 // pred_check_branch
          %129 = sbr.rel (%p127) target = $region20
        $region19: #{pinn_forward.1} parent=11 // pred_region
          _
        $region20: #{pinn_forward.1} parent=11 // pred_fallthru
          _
      $region12: #{pinn_forward.1} parent=5 // pred_fallthru
        _
      %p130 = scmp.lt.s32.totalorder %s15, 2
      // Predicated region
      $region21: #{pinn_forward.1} parent=5 // pred_check
        %p131 = pneg %p130
      $region22: #{pinn_forward.1} parent=5 // pred_check_branch
        %133 = sbr.rel (%p131) target = $region24
      $region23: #{pinn_forward.1} parent=5 // pred_region
        // Predicated region
        $region25: #{pinn_forward.1} parent=23 // pred_check
          %p134 = pneg %p35
        $region26: #{pinn_forward.1} parent=23 // pred_check_branch
          %136 = sbr.rel (%p134) target = $region28
        $region27: #{pinn_forward.1} parent=23 // pred_region
          %s137 = sand.u32 %s25, 1
          %s138 = scalar_lea.sflag [#allocation3], %s137
          %s139 = sand.u32 %s25, 1
          %s140 = smul.addr %s139, 8
          %s141 = scalar_lea.vmem [#allocation2], %s140
          %s142 = smul.u32 8, %s15
          %s144 = ssub.s32 128, 128
          %145 = vsyncadd %s138, %s144
          %s146 = smul.addr %s142, 16
          %s147 = scalar_lea.hbm %s0, %s146
          %s149 = sshll.u32 %s141, 4
          %s150 = int_to_ptr.vmem [resolvable:$true] %s149
          %152 = dma.hbm_to_vmem [thread:$0]  %s147, 128, %s150, %s138
        $region28: #{pinn_forward.1} parent=23 // pred_fallthru
          _
      $region24: #{pinn_forward.1} parent=5 // pred_fallthru
        _
      %p153 = scmp.le.s32.totalorder 1, %s15
      %p154 = scmp.lt.s32.totalorder %s15, 3
      %p155 = pnand %p153, %p154
      %p156 = pneg %p155
      // Predicated region
      $region29: #{pinn_forward.1} parent=5 // pred_check
        _
      $region30: #{pinn_forward.1} parent=5 // pred_check_branch
        %158 = sbr.rel (%p155) target = $region32
      $region31: #{pinn_forward.1} parent=5 // pred_region
        %s159 = ssub.s32 %s15, 1
        %s160 = sand.u32 %s28, 1
        %s161 = scalar_lea.sflag [#allocation3], %s160
        %s162 = sand.u32 %s28, 1
        %s163 = smul.addr %s162, 8
        %s164 = scalar_lea.vmem [#allocation2], %s163
        // Predicated region
        $region33: #{pinn_forward.1} parent=31 // pred_check
          %p165 = pneg %p41
        $region34: #{pinn_forward.1} parent=31 // pred_check_branch
          %167 = sbr.rel (%p165) target = $region36
        $region35: #{pinn_forward.1} parent=31 // pred_region
          %168 = dma.done %s161, 128
        $region36: #{pinn_forward.1} parent=31 // pred_fallthru
          _
        %s169 = sand.u32 %s28, 1
        %s170 = scalar_lea.sflag [#allocation3], %s169
        %s171 = sand.u32 %s28, 1
        %s172 = smul.addr %s171, 8
        %s173 = scalar_lea.vmem [#allocation2], %s172
        %p174 = pneg %p41
        %p175 = pneg %p38
        %p176 = pneg %p62
        %p177 = pneg %p59
        %p178 = pneg %p83
        %p179 = pneg %p80
        %p180 = pneg %p109
        %p181 = pneg %p106
        %s182 = sand.u32 %s96, 1
        %s183 = scalar_lea.sflag [#allocation4], %s182
        %s184 = sand.u32 %s96, 1
        %s185 = smul.addr %s184, 8
        %s186 = scalar_lea.vmem [#allocation5], %s185
        %s187 = smul.u32 8, %s20
        %s188 = smul.u32 8, %s20
        %v189 = vld [vmem:[%s1] sm:$0xff]
        %v190 = vld [vmem:[%s1 + $0x8] sm:$0xff]
        %v191 = vld [vmem:[%s1 + $0x10] sm:$0xf]
        %v192 = vld [vmem:[%s2] sm:$0xff]
        %v193 = vld [vmem:[%s2 + $0x8] sm:$0xff]
        %v194 = vld [vmem:[%s2 + $0x10] sm:$0xf]
        %s195 = scalar_lea.vmem %s1, 96
        %v196 = vld [vmem:[%s195] sm:$0xff]
        %s197 = scalar_lea.vmem %s2, 96
        %v198 = vld [vmem:[%s197] sm:$0xff]
        %s199 = scalar_lea.vmem %s1, 24
        %v200 = vld [vmem:[%s199] sm:$0xff]
        %v201 = vld [vmem:[%s199 + $0x8] sm:$0xff]
        %v202 = vld [vmem:[%s199 + $0x10] sm:$0xf]
        %s203 = scalar_lea.vmem %s1, 48
        %v204 = vld [vmem:[%s203] sm:$0xff]
        %v205 = vld [vmem:[%s203 + $0x8] sm:$0xff]
        %v206 = vld [vmem:[%s203 + $0x10] sm:$0xf]
        %s207 = scalar_lea.vmem %s1, 72
        %v208 = vld [vmem:[%s207] sm:$0xff]
        %v209 = vld [vmem:[%s207 + $0x8] sm:$0xff]
        %v210 = vld [vmem:[%s207 + $0x10] sm:$0xf]
        %s211 = scalar_lea.vmem %s2, 24
        %v212 = vld [vmem:[%s211] sm:$0xff]
        %v213 = vld [vmem:[%s211 + $0x8] sm:$0xff]
        %v214 = vld [vmem:[%s211 + $0x10] sm:$0xf]
        %s215 = scalar_lea.vmem %s2, 48
        %v216 = vld [vmem:[%s215] sm:$0xff]
        %v217 = vld [vmem:[%s215 + $0x8] sm:$0xff]
        %v218 = vld [vmem:[%s215 + $0x10] sm:$0xf]
        %s219 = scalar_lea.vmem %s2, 72
        %v220 = vld [vmem:[%s219] sm:$0xff]
        %v221 = vld [vmem:[%s219 + $0x8] sm:$0xff]
        %v222 = vld [vmem:[%s219 + $0x10] sm:$0xf]
        %v223 = vld [vmem:[%s164] sm:$0x3]
        %v224 = vld [vmem:[%s164 + $0x2] sm:$0x3]
        %226 = vset.pattern.permute.xlu0 0
        %227 = vperm.xlu0 %226, %v189
        %v228 = vpop.permute.xlu0 %227
        %231 = vset.pattern.permute.xlu0 0
        %232 = vperm.xlu0 %231, %v190
        %v233 = vpop.permute.xlu0 %232
        %236 = vset.pattern.permute.xlu0 0
        %237 = vperm.xlu0 %236, %v191
        %v238 = vpop.permute.xlu0 %237
        %v241 = vlaneseq
        %v242 = vshrl.u32 %v241, 7
        %v243 = vsub.s32 0, %v242
        %v244 = vrot.slane %v223, %v243
        %v245 = vlaneseq
        %v246 = vshrl.u32 %v245, 7
        %v247 = vsub.s32 1, %v246
        %v248 = vrot.slane %v223, %v247
        %v251 = vmul.f32 %v228, %v244
        %v252 = vmul.f32 %v228, %v248
        %v253 = vmul.f32 %v233, %v244
        %v254 = vmul.f32 %v233, %v248
        %v255 = vmul.f32 %v238, %v244
        %v256 = vmul.f32 %v238, %v248
        %258 = vset.pattern.permute.xlu0 0
        %259 = vperm.xlu0 %258, %v192
        %v260 = vpop.permute.xlu0 %259
        %263 = vset.pattern.permute.xlu0 0
        %264 = vperm.xlu0 %263, %v193
        %v265 = vpop.permute.xlu0 %264
        %268 = vset.pattern.permute.xlu0 0
        %269 = vperm.xlu0 %268, %v194
        %v270 = vpop.permute.xlu0 %269
        %v272 = vadd.f32 %v251, %v260
        %v273 = vadd.f32 %v252, %v260
        %v274 = vadd.f32 %v253, %v265
        %v275 = vadd.f32 %v254, %v265
        %v276 = vadd.f32 %v255, %v270
        %v277 = vadd.f32 %v256, %v270
        %v278 = vtanh.pop %v272
        %v279 = vtanh.pop %v273
        %v280 = vtanh.pop %v274
        %v281 = vtanh.pop %v275
        %v282 = vtanh.pop %v276
        %v283 = vtanh.pop %v277
        %v285 = vlaneseq
        %v286 = vshrl.u32 %v285, 7
        %v287 = vsub.s32 0, %v286
        %v288 = vrot.slane %v224, %v287
        %v289 = vlaneseq
        %v290 = vshrl.u32 %v289, 7
        %v291 = vsub.s32 1, %v290
        %v292 = vrot.slane %v224, %v291
        %v295 = vmul.f32 %v228, %v288
        %v296 = vmul.f32 %v228, %v292
        %v297 = vmul.f32 %v233, %v288
        %v298 = vmul.f32 %v233, %v292
        %v299 = vmul.f32 %v238, %v288
        %v300 = vmul.f32 %v238, %v292
        %v301 = vadd.f32 %v295, %v260
        %v302 = vadd.f32 %v296, %v260
        %v303 = vadd.f32 %v297, %v265
        %v304 = vadd.f32 %v298, %v265
        %v305 = vadd.f32 %v299, %v270
        %v306 = vadd.f32 %v300, %v270
        %v307 = vtanh.pop %v301
        %v308 = vtanh.pop %v302
        %v309 = vtanh.pop %v303
        %v310 = vtanh.pop %v304
        %v311 = vtanh.pop %v305
        %v312 = vtanh.pop %v306
        %314 = vset.pattern.permute.xlu0 0
        %315 = vperm.xlu0 %314, %v212
        %v316 = vpop.permute.xlu0 %315
        %319 = vset.pattern.permute.xlu0 0
        %320 = vperm.xlu0 %319, %v213
        %v321 = vpop.permute.xlu0 %320
        %324 = vset.pattern.permute.xlu0 0
        %325 = vperm.xlu0 %324, %v214
        %v326 = vpop.permute.xlu0 %325
        %vm328 = vcmask 162816
        %v330 = vsel %vm328, %v200, 0
        %v333 = vsel %vm328, %v201, 0
        %v336 = vsel %vm328, %v202, 0
        %vm338 = vcmask 1043456
        %v340 = vsel %vm338, %v282, 0
        %v343 = vsel %vm338, %v283, 0
        %345 = vmatprep.subr.mxu0 %v279
        %346 = vmatpush1.msra.mxu0 %v278
        %347 = vmatprep.subr.mxu0 %v281
        %348 = vmatpush1.msra.mxu0 %v280
        %349 = vmatprep.subr.mxu0 %v343
        %350 = vmatpush1.msra.mxu0 %v340
        %351 = vmatprep.subr.mxu0 0.0
        %352 = vmatpush1.msra.mxu0 0.0
        %353 = vmatprep.subr.mxu0 0.0
        %354 = vmatpush1.msra.mxu0 0.0
        %355 = vmatprep.subr.mxu0 0.0
        %356 = vmatpush1.msra.mxu0 0.0
        %357 = vmatprep.subr.mxu0 0.0
        %358 = vmatpush1.msra.mxu0 0.0
        %359 = vmatprep.subr.mxu0 0.0
        %360 = vmatpush1.msra.mxu0 0.0
        %361 = vmatprep.subr.mxu0 0.0
        %362 = vmatpush1.msra.mxu0 0.0
        %363 = vmatprep.subr.mxu0 0.0
        %364 = vmatpush1.msra.mxu0 0.0
        %365 = vmatprep.subr.mxu0 0.0
        %366 = vmatpush1.msra.mxu0 0.0
        %367 = vmatprep.subr.mxu0 0.0
        %368 = vmatpush1.msra.mxu0 0.0
        %369 = vmatprep.subr.mxu0 0.0
        %370 = vmatpush1.msra.mxu0 0.0
        %371 = vmatprep.subr.mxu0 0.0
        %372 = vmatpush1.msra.mxu0 0.0
        %373 = vmatprep.subr.mxu0 0.0
        %374 = vmatpush1.msra.mxu0 0.0
        %375 = vmatprep.subr.mxu0 0.0
        %376 = vmatpush1.msra.mxu0 0.0
        %377 = vmatprep.subr.mxu0 0.0
        %378 = vmatpush1.msra.mxu0 0.0
        %379 = vmatprep.subr.mxu0 0.0
        %380 = vmatpush1.msra.mxu0 0.0
        %381 = vmatprep.subr.mxu0 0.0
        %382 = vmatpush1.msra.mxu0 0.0
        %383 = vmatprep.subr.mxu0 0.0
        %384 = vmatpush1.msra.mxu0 0.0
        %385 = vmatprep.subr.mxu0 0.0
        %386 = vmatpush1.msra.mxu0 0.0
        %387 = vmatprep.subr.mxu0 0.0
        %388 = vmatpush1.msra.mxu0 0.0
        %389 = vmatprep.subr.mxu0 0.0
        %390 = vmatpush1.msra.mxu0 0.0
        %391 = vmatprep.subr.mxu0 0.0
        %392 = vmatpush1.msra.mxu0 0.0
        %393 = vmatprep.subr.mxu0 0.0
        %394 = vmatpush1.msra.mxu0 0.0
        %395 = vmatprep.subr.mxu0 0.0
        %396 = vmatpush1.msra.mxu0 0.0
        %397 = vmatprep.subr.mxu0 0.0
        %398 = vmatpush1.msra.mxu0 0.0
        %399 = vmatprep.subr.mxu0 0.0
        %400 = vmatpush1.msra.mxu0 0.0
        %401 = vmatprep.subr.mxu0 0.0
        %402 = vmatpush1.msra.mxu0 0.0
        %403 = vmatprep.subr.mxu0 0.0
        %404 = vmatpush1.msra.mxu0 0.0
        %405 = vmatprep.subr.mxu0 0.0
        %406 = vmatpush1.msra.mxu0 0.0
        %407 = vmatprep.subr.mxu0 0.0
        %408 = vmatpush1.msra.mxu0 0.0
        %409 = vmatprep.mubr.f32.mxu0 0.0
        %410 = vmatmul.mubr.f32.gmra.mrb[0].mxu0 %v330
        %v411 = vpop.f32.mrb[0].mxu0
        %v412 = vadd.f32 %v316, %v411
        %v413 = vpop.f32.mrb[0].mxu0
        %v414 = vadd.f32 %v316, %v413
        %415 = vmatprep.mubr.f32.mxu0 0.0
        %416 = vmatmul.mubr.f32.gmra.mrb[0].mxu0 %v333
        %v417 = vpop.f32.mrb[0].mxu0
        %v418 = vadd.f32 %v321, %v417
        %v419 = vpop.f32.mrb[0].mxu0
        %v420 = vadd.f32 %v321, %v419
        %421 = vmatprep.mubr.f32.mxu0 0.0
        %422 = vmatmul.mubr.f32.gmra.mrb[0].mxu0 %v336
        %v423 = vpop.f32.mrb[0].mxu0
        %v424 = vadd.f32 %v326, %v423
        %v425 = vpop.f32.mrb[0].mxu0
        %v426 = vadd.f32 %v326, %v425
        %427 = vdwg.mxu0
        %v428 = vtanh.pop %v412
        %v429 = vtanh.pop %v414
        %v430 = vtanh.pop %v418
        %v431 = vtanh.pop %v420
        %v432 = vtanh.pop %v424
        %v433 = vtanh.pop %v426
        %v435 = vsel %vm338, %v311, 0
        %v438 = vsel %vm338, %v312, 0
        %440 = vmatprep.subr.mxu0 %v308
        %441 = vmatpush1.msra.mxu0 %v307
        %442 = vmatprep.subr.mxu0 %v310
        %443 = vmatpush1.msra.mxu0 %v309
        %444 = vmatprep.subr.mxu0 %v438
        %445 = vmatpush1.msra.mxu0 %v435
        %446 = vmatprep.subr.mxu0 0.0
        %447 = vmatpush1.msra.mxu0 0.0
        %448 = vmatprep.subr.mxu0 0.0
        %449 = vmatpush1.msra.mxu0 0.0
        %450 = vmatprep.subr.mxu0 0.0
        %451 = vmatpush1.msra.mxu0 0.0
        %452 = vmatprep.subr.mxu0 0.0
        %453 = vmatpush1.msra.mxu0 0.0
        %454 = vmatprep.subr.mxu0 0.0
        %455 = vmatpush1.msra.mxu0 0.0
        %456 = vmatprep.subr.mxu0 0.0
        %457 = vmatpush1.msra.mxu0 0.0
        %458 = vmatprep.subr.mxu0 0.0
        %459 = vmatpush1.msra.mxu0 0.0
        %460 = vmatprep.subr.mxu0 0.0
        %461 = vmatpush1.msra.mxu0 0.0
        %462 = vmatprep.subr.mxu0 0.0
        %463 = vmatpush1.msra.mxu0 0.0
        %464 = vmatprep.subr.mxu0 0.0
        %465 = vmatpush1.msra.mxu0 0.0
        %466 = vmatprep.subr.mxu0 0.0
        %467 = vmatpush1.msra.mxu0 0.0
        %468 = vmatprep.subr.mxu0 0.0
        %469 = vmatpush1.msra.mxu0 0.0
        %470 = vmatprep.subr.mxu0 0.0
        %471 = vmatpush1.msra.mxu0 0.0
        %472 = vmatprep.subr.mxu0 0.0
        %473 = vmatpush1.msra.mxu0 0.0
        %474 = vmatprep.subr.mxu0 0.0
        %475 = vmatpush1.msra.mxu0 0.0
        %476 = vmatprep.subr.mxu0 0.0
        %477 = vmatpush1.msra.mxu0 0.0
        %478 = vmatprep.subr.mxu0 0.0
        %479 = vmatpush1.msra.mxu0 0.0
        %480 = vmatprep.subr.mxu0 0.0
        %481 = vmatpush1.msra.mxu0 0.0
        %482 = vmatprep.subr.mxu0 0.0
        %483 = vmatpush1.msra.mxu0 0.0
        %484 = vmatprep.subr.mxu0 0.0
        %485 = vmatpush1.msra.mxu0 0.0
        %486 = vmatprep.subr.mxu0 0.0
        %487 = vmatpush1.msra.mxu0 0.0
        %488 = vmatprep.subr.mxu0 0.0
        %489 = vmatpush1.msra.mxu0 0.0
        %490 = vmatprep.subr.mxu0 0.0
        %491 = vmatpush1.msra.mxu0 0.0
        %492 = vmatprep.subr.mxu0 0.0
        %493 = vmatpush1.msra.mxu0 0.0
        %494 = vmatprep.subr.mxu0 0.0
        %495 = vmatpush1.msra.mxu0 0.0
        %496 = vmatprep.subr.mxu0 0.0
        %497 = vmatpush1.msra.mxu0 0.0
        %498 = vmatprep.subr.mxu0 0.0
        %499 = vmatpush1.msra.mxu0 0.0
        %500 = vmatprep.subr.mxu0 0.0
        %501 = vmatpush1.msra.mxu0 0.0
        %502 = vmatprep.subr.mxu0 0.0
        %503 = vmatpush1.msra.mxu0 0.0
        %504 = vmatprep.mubr.f32.mxu0 0.0
        %505 = vmatmul.mubr.f32.gmra.mrb[0].mxu0 %v330
        %v506 = vpop.f32.mrb[0].mxu0
        %v507 = vadd.f32 %v316, %v506
        %v508 = vpop.f32.mrb[0].mxu0
        %v509 = vadd.f32 %v316, %v508
        %510 = vmatprep.mubr.f32.mxu0 0.0
        %511 = vmatmul.mubr.f32.gmra.mrb[0].mxu0 %v333
        %v512 = vpop.f32.mrb[0].mxu0
        %v513 = vadd.f32 %v321, %v512
        %v514 = vpop.f32.mrb[0].mxu0
        %v515 = vadd.f32 %v321, %v514
        %516 = vmatprep.mubr.f32.mxu0 0.0
        %517 = vmatmul.mubr.f32.gmra.mrb[0].mxu0 %v336
        %v518 = vpop.f32.mrb[0].mxu0
        %v519 = vadd.f32 %v326, %v518
        %v520 = vpop.f32.mrb[0].mxu0
        %v521 = vadd.f32 %v326, %v520
        %522 = vdwg.mxu0
        %v523 = vtanh.pop %v507
        %v524 = vtanh.pop %v509
        %v525 = vtanh.pop %v513
        %v526 = vtanh.pop %v515
        %v527 = vtanh.pop %v519
        %v528 = vtanh.pop %v521
        %530 = vset.pattern.permute.xlu0 0
        %531 = vperm.xlu0 %530, %v216
        %v532 = vpop.permute.xlu0 %531
        %535 = vset.pattern.permute.xlu0 0
        %536 = vperm.xlu0 %535, %v217
        %v537 = vpop.permute.xlu0 %536
        %540 = vset.pattern.permute.xlu0 0
        %541 = vperm.xlu0 %540, %v218
        %v542 = vpop.permute.xlu0 %541
        %v545 = vsel %vm328, %v204, 0
        %v548 = vsel %vm328, %v205, 0
        %v551 = vsel %vm328, %v206, 0
        %v554 = vsel %vm338, %v432, 0
        %v557 = vsel %vm338, %v433, 0
        %559 = vmatprep.subr.mxu0 %v429
        %560 = vmatpush1.msra.mxu0 %v428
        %561 = vmatprep.subr.mxu0 %v431
        %562 = vmatpush1.msra.mxu0 %v430
        %563 = vmatprep.subr.mxu0 %v557
        %564 = vmatpush1.msra.mxu0 %v554
        %565 = vmatprep.subr.mxu0 0.0
        %566 = vmatpush1.msra.mxu0 0.0
        %567 = vmatprep.subr.mxu0 0.0
        %568 = vmatpush1.msra.mxu0 0.0
        %569 = vmatprep.subr.mxu0 0.0
        %570 = vmatpush1.msra.mxu0 0.0
        %571 = vmatprep.subr.mxu0 0.0
        %572 = vmatpush1.msra.mxu0 0.0
        %573 = vmatprep.subr.mxu0 0.0
        %574 = vmatpush1.msra.mxu0 0.0
        %575 = vmatprep.subr.mxu0 0.0
        %576 = vmatpush1.msra.mxu0 0.0
        %577 = vmatprep.subr.mxu0 0.0
        %578 = vmatpush1.msra.mxu0 0.0
        %579 = vmatprep.subr.mxu0 0.0
        %580 = vmatpush1.msra.mxu0 0.0
        %581 = vmatprep.subr.mxu0 0.0
        %582 = vmatpush1.msra.mxu0 0.0
        %583 = vmatprep.subr.mxu0 0.0
        %584 = vmatpush1.msra.mxu0 0.0
        %585 = vmatprep.subr.mxu0 0.0
        %586 = vmatpush1.msra.mxu0 0.0
        %587 = vmatprep.subr.mxu0 0.0
        %588 = vmatpush1.msra.mxu0 0.0
        %589 = vmatprep.subr.mxu0 0.0
        %590 = vmatpush1.msra.mxu0 0.0
        %591 = vmatprep.subr.mxu0 0.0
        %592 = vmatpush1.msra.mxu0 0.0
        %593 = vmatprep.subr.mxu0 0.0
        %594 = vmatpush1.msra.mxu0 0.0
        %595 = vmatprep.subr.mxu0 0.0
        %596 = vmatpush1.msra.mxu0 0.0
        %597 = vmatprep.subr.mxu0 0.0
        %598 = vmatpush1.msra.mxu0 0.0
        %599 = vmatprep.subr.mxu0 0.0
        %600 = vmatpush1.msra.mxu0 0.0
        %601 = vmatprep.subr.mxu0 0.0
        %602 = vmatpush1.msra.mxu0 0.0
        %603 = vmatprep.subr.mxu0 0.0
        %604 = vmatpush1.msra.mxu0 0.0
        %605 = vmatprep.subr.mxu0 0.0
        %606 = vmatpush1.msra.mxu0 0.0
        %607 = vmatprep.subr.mxu0 0.0
        %608 = vmatpush1.msra.mxu0 0.0
        %609 = vmatprep.subr.mxu0 0.0
        %610 = vmatpush1.msra.mxu0 0.0
        %611 = vmatprep.subr.mxu0 0.0
        %612 = vmatpush1.msra.mxu0 0.0
        %613 = vmatprep.subr.mxu0 0.0
        %614 = vmatpush1.msra.mxu0 0.0
        %615 = vmatprep.subr.mxu0 0.0
        %616 = vmatpush1.msra.mxu0 0.0
        %617 = vmatprep.subr.mxu0 0.0
        %618 = vmatpush1.msra.mxu0 0.0
        %619 = vmatprep.subr.mxu0 0.0
        %620 = vmatpush1.msra.mxu0 0.0
        %621 = vmatprep.subr.mxu0 0.0
        %622 = vmatpush1.msra.mxu0 0.0
        %623 = vmatprep.mubr.f32.mxu0 0.0
        %624 = vmatmul.mubr.f32.gmra.mrb[0].mxu0 %v545
        %v625 = vpop.f32.mrb[0].mxu0
        %v626 = vadd.f32 %v532, %v625
        %v627 = vpop.f32.mrb[0].mxu0
        %v628 = vadd.f32 %v532, %v627
        %629 = vmatprep.mubr.f32.mxu0 0.0
        %630 = vmatmul.mubr.f32.gmra.mrb[0].mxu0 %v548
        %v631 = vpop.f32.mrb[0].mxu0
        %v632 = vadd.f32 %v537, %v631
        %v633 = vpop.f32.mrb[0].mxu0
        %v634 = vadd.f32 %v537, %v633
        %635 = vmatprep.mubr.f32.mxu0 0.0
        %636 = vmatmul.mubr.f32.gmra.mrb[0].mxu0 %v551
        %v637 = vpop.f32.mrb[0].mxu0
        %v638 = vadd.f32 %v542, %v637
        %v639 = vpop.f32.mrb[0].mxu0
        %v640 = vadd.f32 %v542, %v639
        %641 = vdwg.mxu0
        %v642 = vtanh.pop %v626
        %v643 = vtanh.pop %v628
        %v644 = vtanh.pop %v632
        %v645 = vtanh.pop %v634
        %v646 = vtanh.pop %v638
        %v647 = vtanh.pop %v640
        %v649 = vsel %vm338, %v527, 0
        %v652 = vsel %vm338, %v528, 0
        %654 = vmatprep.subr.mxu0 %v524
        %655 = vmatpush1.msra.mxu0 %v523
        %656 = vmatprep.subr.mxu0 %v526
        %657 = vmatpush1.msra.mxu0 %v525
        %658 = vmatprep.subr.mxu0 %v652
        %659 = vmatpush1.msra.mxu0 %v649
        %660 = vmatprep.subr.mxu0 0.0
        %661 = vmatpush1.msra.mxu0 0.0
        %662 = vmatprep.subr.mxu0 0.0
        %663 = vmatpush1.msra.mxu0 0.0
        %664 = vmatprep.subr.mxu0 0.0
        %665 = vmatpush1.msra.mxu0 0.0
        %666 = vmatprep.subr.mxu0 0.0
        %667 = vmatpush1.msra.mxu0 0.0
        %668 = vmatprep.subr.mxu0 0.0
        %669 = vmatpush1.msra.mxu0 0.0
        %670 = vmatprep.subr.mxu0 0.0
        %671 = vmatpush1.msra.mxu0 0.0
        %672 = vmatprep.subr.mxu0 0.0
        %673 = vmatpush1.msra.mxu0 0.0
        %674 = vmatprep.subr.mxu0 0.0
        %675 = vmatpush1.msra.mxu0 0.0
        %676 = vmatprep.subr.mxu0 0.0
        %677 = vmatpush1.msra.mxu0 0.0
        %678 = vmatprep.subr.mxu0 0.0
        %679 = vmatpush1.msra.mxu0 0.0
        %680 = vmatprep.subr.mxu0 0.0
        %681 = vmatpush1.msra.mxu0 0.0
        %682 = vmatprep.subr.mxu0 0.0
        %683 = vmatpush1.msra.mxu0 0.0
        %684 = vmatprep.subr.mxu0 0.0
        %685 = vmatpush1.msra.mxu0 0.0
        %686 = vmatprep.subr.mxu0 0.0
        %687 = vmatpush1.msra.mxu0 0.0
        %688 = vmatprep.subr.mxu0 0.0
        %689 = vmatpush1.msra.mxu0 0.0
        %690 = vmatprep.subr.mxu0 0.0
        %691 = vmatpush1.msra.mxu0 0.0
        %692 = vmatprep.subr.mxu0 0.0
        %693 = vmatpush1.msra.mxu0 0.0
        %694 = vmatprep.subr.mxu0 0.0
        %695 = vmatpush1.msra.mxu0 0.0
        %696 = vmatprep.subr.mxu0 0.0
        %697 = vmatpush1.msra.mxu0 0.0
        %698 = vmatprep.subr.mxu0 0.0
        %699 = vmatpush1.msra.mxu0 0.0
        %700 = vmatprep.subr.mxu0 0.0
        %701 = vmatpush1.msra.mxu0 0.0
        %702 = vmatprep.subr.mxu0 0.0
        %703 = vmatpush1.msra.mxu0 0.0
        %704 = vmatprep.subr.mxu0 0.0
        %705 = vmatpush1.msra.mxu0 0.0
        %706 = vmatprep.subr.mxu0 0.0
        %707 = vmatpush1.msra.mxu0 0.0
        %708 = vmatprep.subr.mxu0 0.0
        %709 = vmatpush1.msra.mxu0 0.0
        %710 = vmatprep.subr.mxu0 0.0
        %711 = vmatpush1.msra.mxu0 0.0
        %712 = vmatprep.subr.mxu0 0.0
        %713 = vmatpush1.msra.mxu0 0.0
        %714 = vmatprep.subr.mxu0 0.0
        %715 = vmatpush1.msra.mxu0 0.0
        %716 = vmatprep.subr.mxu0 0.0
        %717 = vmatpush1.msra.mxu0 0.0
        %718 = vmatprep.mubr.f32.mxu0 0.0
        %719 = vmatmul.mubr.f32.gmra.mrb[0].mxu0 %v545
        %v720 = vpop.f32.mrb[0].mxu0
        %v721 = vadd.f32 %v532, %v720
        %v722 = vpop.f32.mrb[0].mxu0
        %v723 = vadd.f32 %v532, %v722
        %724 = vmatprep.mubr.f32.mxu0 0.0
        %725 = vmatmul.mubr.f32.gmra.mrb[0].mxu0 %v548
        %v726 = vpop.f32.mrb[0].mxu0
        %v727 = vadd.f32 %v537, %v726
        %v728 = vpop.f32.mrb[0].mxu0
        %v729 = vadd.f32 %v537, %v728
        %730 = vmatprep.mubr.f32.mxu0 0.0
        %731 = vmatmul.mubr.f32.gmra.mrb[0].mxu0 %v551
        %v732 = vpop.f32.mrb[0].mxu0
        %v733 = vadd.f32 %v542, %v732
        %v734 = vpop.f32.mrb[0].mxu0
        %v735 = vadd.f32 %v542, %v734
        %736 = vdwg.mxu0
        %v737 = vtanh.pop %v721
        %v738 = vtanh.pop %v723
        %v739 = vtanh.pop %v727
        %v740 = vtanh.pop %v729
        %v741 = vtanh.pop %v733
        %v742 = vtanh.pop %v735
        %744 = vset.pattern.permute.xlu0 0
        %745 = vperm.xlu0 %744, %v220
        %v746 = vpop.permute.xlu0 %745
        %749 = vset.pattern.permute.xlu0 0
        %750 = vperm.xlu0 %749, %v221
        %v751 = vpop.permute.xlu0 %750
        %754 = vset.pattern.permute.xlu0 0
        %755 = vperm.xlu0 %754, %v222
        %v756 = vpop.permute.xlu0 %755
        %v759 = vsel %vm328, %v208, 0
        %v762 = vsel %vm328, %v209, 0
        %v765 = vsel %vm328, %v210, 0
        %v768 = vsel %vm338, %v646, 0
        %v771 = vsel %vm338, %v647, 0
        %773 = vmatprep.subr.mxu0 %v643
        %774 = vmatpush1.msra.mxu0 %v642
        %775 = vmatprep.subr.mxu0 %v645
        %776 = vmatpush1.msra.mxu0 %v644
        %777 = vmatprep.subr.mxu0 %v771
        %778 = vmatpush1.msra.mxu0 %v768
        %779 = vmatprep.subr.mxu0 0.0
        %780 = vmatpush1.msra.mxu0 0.0
        %781 = vmatprep.subr.mxu0 0.0
        %782 = vmatpush1.msra.mxu0 0.0
        %783 = vmatprep.subr.mxu0 0.0
        %784 = vmatpush1.msra.mxu0 0.0
        %785 = vmatprep.subr.mxu0 0.0
        %786 = vmatpush1.msra.mxu0 0.0
        %787 = vmatprep.subr.mxu0 0.0
        %788 = vmatpush1.msra.mxu0 0.0
        %789 = vmatprep.subr.mxu0 0.0
        %790 = vmatpush1.msra.mxu0 0.0
        %791 = vmatprep.subr.mxu0 0.0
        %792 = vmatpush1.msra.mxu0 0.0
        %793 = vmatprep.subr.mxu0 0.0
        %794 = vmatpush1.msra.mxu0 0.0
        %795 = vmatprep.subr.mxu0 0.0
        %796 = vmatpush1.msra.mxu0 0.0
        %797 = vmatprep.subr.mxu0 0.0
        %798 = vmatpush1.msra.mxu0 0.0
        %799 = vmatprep.subr.mxu0 0.0
        %800 = vmatpush1.msra.mxu0 0.0
        %801 = vmatprep.subr.mxu0 0.0
        %802 = vmatpush1.msra.mxu0 0.0
        %803 = vmatprep.subr.mxu0 0.0
        %804 = vmatpush1.msra.mxu0 0.0
        %805 = vmatprep.subr.mxu0 0.0
        %806 = vmatpush1.msra.mxu0 0.0
        %807 = vmatprep.subr.mxu0 0.0
        %808 = vmatpush1.msra.mxu0 0.0
        %809 = vmatprep.subr.mxu0 0.0
        %810 = vmatpush1.msra.mxu0 0.0
        %811 = vmatprep.subr.mxu0 0.0
        %812 = vmatpush1.msra.mxu0 0.0
        %813 = vmatprep.subr.mxu0 0.0
        %814 = vmatpush1.msra.mxu0 0.0
        %815 = vmatprep.subr.mxu0 0.0
        %816 = vmatpush1.msra.mxu0 0.0
        %817 = vmatprep.subr.mxu0 0.0
        %818 = vmatpush1.msra.mxu0 0.0
        %819 = vmatprep.subr.mxu0 0.0
        %820 = vmatpush1.msra.mxu0 0.0
        %821 = vmatprep.subr.mxu0 0.0
        %822 = vmatpush1.msra.mxu0 0.0
        %823 = vmatprep.subr.mxu0 0.0
        %824 = vmatpush1.msra.mxu0 0.0
        %825 = vmatprep.subr.mxu0 0.0
        %826 = vmatpush1.msra.mxu0 0.0
        %827 = vmatprep.subr.mxu0 0.0
        %828 = vmatpush1.msra.mxu0 0.0
        %829 = vmatprep.subr.mxu0 0.0
        %830 = vmatpush1.msra.mxu0 0.0
        %831 = vmatprep.subr.mxu0 0.0
        %832 = vmatpush1.msra.mxu0 0.0
        %833 = vmatprep.subr.mxu0 0.0
        %834 = vmatpush1.msra.mxu0 0.0
        %835 = vmatprep.subr.mxu0 0.0
        %836 = vmatpush1.msra.mxu0 0.0
        %837 = vmatprep.mubr.f32.mxu0 0.0
        %838 = vmatmul.mubr.f32.gmra.mrb[0].mxu0 %v759
        %v839 = vpop.f32.mrb[0].mxu0
        %v840 = vadd.f32 %v746, %v839
        %v841 = vpop.f32.mrb[0].mxu0
        %v842 = vadd.f32 %v746, %v841
        %843 = vmatprep.mubr.f32.mxu0 0.0
        %844 = vmatmul.mubr.f32.gmra.mrb[0].mxu0 %v762
        %v845 = vpop.f32.mrb[0].mxu0
        %v846 = vadd.f32 %v751, %v845
        %v847 = vpop.f32.mrb[0].mxu0
        %v848 = vadd.f32 %v751, %v847
        %849 = vmatprep.mubr.f32.mxu0 0.0
        %850 = vmatmul.mubr.f32.gmra.mrb[0].mxu0 %v765
        %v851 = vpop.f32.mrb[0].mxu0
        %v852 = vadd.f32 %v756, %v851
        %v853 = vpop.f32.mrb[0].mxu0
        %v854 = vadd.f32 %v756, %v853
        %855 = vdwg.mxu0
        %v856 = vtanh.pop %v840
        %v857 = vtanh.pop %v842
        %v858 = vtanh.pop %v846
        %v859 = vtanh.pop %v848
        %v860 = vtanh.pop %v852
        %v861 = vtanh.pop %v854
        %v863 = vsel %vm338, %v741, 0
        %v866 = vsel %vm338, %v742, 0
        %868 = vmatprep.subr.mxu0 %v738
        %869 = vmatpush1.msra.mxu0 %v737
        %870 = vmatprep.subr.mxu0 %v740
        %871 = vmatpush1.msra.mxu0 %v739
        %872 = vmatprep.subr.mxu0 %v866
        %873 = vmatpush1.msra.mxu0 %v863
        %874 = vmatprep.subr.mxu0 0.0
        %875 = vmatpush1.msra.mxu0 0.0
        %876 = vmatprep.subr.mxu0 0.0
        %877 = vmatpush1.msra.mxu0 0.0
        %878 = vmatprep.subr.mxu0 0.0
        %879 = vmatpush1.msra.mxu0 0.0
        %880 = vmatprep.subr.mxu0 0.0
        %881 = vmatpush1.msra.mxu0 0.0
        %882 = vmatprep.subr.mxu0 0.0
        %883 = vmatpush1.msra.mxu0 0.0
        %884 = vmatprep.subr.mxu0 0.0
        %885 = vmatpush1.msra.mxu0 0.0
        %886 = vmatprep.subr.mxu0 0.0
        %887 = vmatpush1.msra.mxu0 0.0
        %888 = vmatprep.subr.mxu0 0.0
        %889 = vmatpush1.msra.mxu0 0.0
        %890 = vmatprep.subr.mxu0 0.0
        %891 = vmatpush1.msra.mxu0 0.0
        %892 = vmatprep.subr.mxu0 0.0
        %893 = vmatpush1.msra.mxu0 0.0
        %894 = vmatprep.subr.mxu0 0.0
        %895 = vmatpush1.msra.mxu0 0.0
        %896 = vmatprep.subr.mxu0 0.0
        %897 = vmatpush1.msra.mxu0 0.0
        %898 = vmatprep.subr.mxu0 0.0
        %899 = vmatpush1.msra.mxu0 0.0
        %900 = vmatprep.subr.mxu0 0.0
        %901 = vmatpush1.msra.mxu0 0.0
        %902 = vmatprep.subr.mxu0 0.0
        %903 = vmatpush1.msra.mxu0 0.0
        %904 = vmatprep.subr.mxu0 0.0
        %905 = vmatpush1.msra.mxu0 0.0
        %906 = vmatprep.subr.mxu0 0.0
        %907 = vmatpush1.msra.mxu0 0.0
        %908 = vmatprep.subr.mxu0 0.0
        %909 = vmatpush1.msra.mxu0 0.0
        %910 = vmatprep.subr.mxu0 0.0
        %911 = vmatpush1.msra.mxu0 0.0
        %912 = vmatprep.subr.mxu0 0.0
        %913 = vmatpush1.msra.mxu0 0.0
        %914 = vmatprep.subr.mxu0 0.0
        %915 = vmatpush1.msra.mxu0 0.0
        %916 = vmatprep.subr.mxu0 0.0
        %917 = vmatpush1.msra.mxu0 0.0
        %918 = vmatprep.subr.mxu0 0.0
        %919 = vmatpush1.msra.mxu0 0.0
        %920 = vmatprep.subr.mxu0 0.0
        %921 = vmatpush1.msra.mxu0 0.0
        %922 = vmatprep.subr.mxu0 0.0
        %923 = vmatpush1.msra.mxu0 0.0
        %924 = vmatprep.subr.mxu0 0.0
        %925 = vmatpush1.msra.mxu0 0.0
        %926 = vmatprep.subr.mxu0 0.0
        %927 = vmatpush1.msra.mxu0 0.0
        %928 = vmatprep.subr.mxu0 0.0
        %929 = vmatpush1.msra.mxu0 0.0
        %930 = vmatprep.subr.mxu0 0.0
        %931 = vmatpush1.msra.mxu0 0.0
        %932 = vmatprep.mubr.f32.mxu0 0.0
        %933 = vmatmul.mubr.f32.gmra.mrb[0].mxu0 %v759
        %v934 = vpop.f32.mrb[0].mxu0
        %v935 = vadd.f32 %v746, %v934
        %v936 = vpop.f32.mrb[0].mxu0
        %v937 = vadd.f32 %v746, %v936
        %938 = vmatprep.mubr.f32.mxu0 0.0
        %939 = vmatmul.mubr.f32.gmra.mrb[0].mxu0 %v762
        %v940 = vpop.f32.mrb[0].mxu0
        %v941 = vadd.f32 %v751, %v940
        %v942 = vpop.f32.mrb[0].mxu0
        %v943 = vadd.f32 %v751, %v942
        %944 = vmatprep.mubr.f32.mxu0 0.0
        %945 = vmatmul.mubr.f32.gmra.mrb[0].mxu0 %v765
        %v946 = vpop.f32.mrb[0].mxu0
        %v947 = vadd.f32 %v756, %v946
        %v948 = vpop.f32.mrb[0].mxu0
        %v949 = vadd.f32 %v756, %v948
        %950 = vdwg.mxu0
        %v951 = vtanh.pop %v935
        %v952 = vtanh.pop %v937
        %v953 = vtanh.pop %v941
        %v954 = vtanh.pop %v943
        %v955 = vtanh.pop %v947
        %v956 = vtanh.pop %v949
        %958 = vset.pattern.permute.xlu0 0
        %959 = vperm.xlu0 %958, %v198
        %v960 = vpop.permute.xlu0 %959
        %v963 = vsel %vm328, %v196, 0
        %v966 = vsel %vm338, %v860, 0
        %v969 = vsel %vm338, %v861, 0
        %971 = vmatprep.subr.mxu0 %v857
        %972 = vmatpush1.msra.mxu0 %v856
        %973 = vmatprep.subr.mxu0 %v859
        %974 = vmatpush1.msra.mxu0 %v858
        %975 = vmatprep.subr.mxu0 %v969
        %976 = vmatpush1.msra.mxu0 %v966
        %977 = vmatprep.subr.mxu0 0.0
        %978 = vmatpush1.msra.mxu0 0.0
        %979 = vmatprep.subr.mxu0 0.0
        %980 = vmatpush1.msra.mxu0 0.0
        %981 = vmatprep.subr.mxu0 0.0
        %982 = vmatpush1.msra.mxu0 0.0
        %983 = vmatprep.subr.mxu0 0.0
        %984 = vmatpush1.msra.mxu0 0.0
        %985 = vmatprep.subr.mxu0 0.0
        %986 = vmatpush1.msra.mxu0 0.0
        %987 = vmatprep.subr.mxu0 0.0
        %988 = vmatpush1.msra.mxu0 0.0
        %989 = vmatprep.subr.mxu0 0.0
        %990 = vmatpush1.msra.mxu0 0.0
        %991 = vmatprep.subr.mxu0 0.0
        %992 = vmatpush1.msra.mxu0 0.0
        %993 = vmatprep.subr.mxu0 0.0
        %994 = vmatpush1.msra.mxu0 0.0
        %995 = vmatprep.subr.mxu0 0.0
        %996 = vmatpush1.msra.mxu0 0.0
        %997 = vmatprep.subr.mxu0 0.0
        %998 = vmatpush1.msra.mxu0 0.0
        %999 = vmatprep.subr.mxu0 0.0
        %1000 = vmatpush1.msra.mxu0 0.0
        %1001 = vmatprep.subr.mxu0 0.0
        %1002 = vmatpush1.msra.mxu0 0.0
        %1003 = vmatprep.subr.mxu0 0.0
        %1004 = vmatpush1.msra.mxu0 0.0
        %1005 = vmatprep.subr.mxu0 0.0
        %1006 = vmatpush1.msra.mxu0 0.0
        %1007 = vmatprep.subr.mxu0 0.0
        %1008 = vmatpush1.msra.mxu0 0.0
        %1009 = vmatprep.subr.mxu0 0.0
        %1010 = vmatpush1.msra.mxu0 0.0
        %1011 = vmatprep.subr.mxu0 0.0
        %1012 = vmatpush1.msra.mxu0 0.0
        %1013 = vmatprep.subr.mxu0 0.0
        %1014 = vmatpush1.msra.mxu0 0.0
        %1015 = vmatprep.subr.mxu0 0.0
        %1016 = vmatpush1.msra.mxu0 0.0
        %1017 = vmatprep.subr.mxu0 0.0
        %1018 = vmatpush1.msra.mxu0 0.0
        %1019 = vmatprep.subr.mxu0 0.0
        %1020 = vmatpush1.msra.mxu0 0.0
        %1021 = vmatprep.subr.mxu0 0.0
        %1022 = vmatpush1.msra.mxu0 0.0
        %1023 = vmatprep.subr.mxu0 0.0
        %1024 = vmatpush1.msra.mxu0 0.0
        %1025 = vmatprep.subr.mxu0 0.0
        %1026 = vmatpush1.msra.mxu0 0.0
        %1027 = vmatprep.subr.mxu0 0.0
        %1028 = vmatpush1.msra.mxu0 0.0
        %1029 = vmatprep.subr.mxu0 0.0
        %1030 = vmatpush1.msra.mxu0 0.0
        %1031 = vmatprep.subr.mxu0 0.0
        %1032 = vmatpush1.msra.mxu0 0.0
        %1033 = vmatprep.subr.mxu0 0.0
        %1034 = vmatpush1.msra.mxu0 0.0
        %1035 = vmatprep.mubr.f32.mxu0 0.0
        %1036 = vmatmul.mubr.f32.gmra.mrb[0].mxu0 %v963
        %v1037 = vpop.f32.mrb[0].mxu0
        %v1038 = vadd.f32 %v960, %v1037
        %v1039 = vpop.f32.mrb[0].mxu0
        %v1040 = vadd.f32 %v960, %v1039
        %1041 = vdwg.mxu0
        %v1043 = vsel %vm338, %v955, 0
        %v1046 = vsel %vm338, %v956, 0
        %1048 = vmatprep.subr.mxu0 %v952
        %1049 = vmatpush1.msra.mxu0 %v951
        %1050 = vmatprep.subr.mxu0 %v954
        %1051 = vmatpush1.msra.mxu0 %v953
        %1052 = vmatprep.subr.mxu0 %v1046
        %1053 = vmatpush1.msra.mxu0 %v1043
        %1054 = vmatprep.subr.mxu0 0.0
        %1055 = vmatpush1.msra.mxu0 0.0
        %1056 = vmatprep.subr.mxu0 0.0
        %1057 = vmatpush1.msra.mxu0 0.0
        %1058 = vmatprep.subr.mxu0 0.0
        %1059 = vmatpush1.msra.mxu0 0.0
        %1060 = vmatprep.subr.mxu0 0.0
        %1061 = vmatpush1.msra.mxu0 0.0
        %1062 = vmatprep.subr.mxu0 0.0
        %1063 = vmatpush1.msra.mxu0 0.0
        %1064 = vmatprep.subr.mxu0 0.0
        %1065 = vmatpush1.msra.mxu0 0.0
        %1066 = vmatprep.subr.mxu0 0.0
        %1067 = vmatpush1.msra.mxu0 0.0
        %1068 = vmatprep.subr.mxu0 0.0
        %1069 = vmatpush1.msra.mxu0 0.0
        %1070 = vmatprep.subr.mxu0 0.0
        %1071 = vmatpush1.msra.mxu0 0.0
        %1072 = vmatprep.subr.mxu0 0.0
        %1073 = vmatpush1.msra.mxu0 0.0
        %1074 = vmatprep.subr.mxu0 0.0
        %1075 = vmatpush1.msra.mxu0 0.0
        %1076 = vmatprep.subr.mxu0 0.0
        %1077 = vmatpush1.msra.mxu0 0.0
        %1078 = vmatprep.subr.mxu0 0.0
        %1079 = vmatpush1.msra.mxu0 0.0
        %1080 = vmatprep.subr.mxu0 0.0
        %1081 = vmatpush1.msra.mxu0 0.0
        %1082 = vmatprep.subr.mxu0 0.0
        %1083 = vmatpush1.msra.mxu0 0.0
        %1084 = vmatprep.subr.mxu0 0.0
        %1085 = vmatpush1.msra.mxu0 0.0
        %1086 = vmatprep.subr.mxu0 0.0
        %1087 = vmatpush1.msra.mxu0 0.0
        %1088 = vmatprep.subr.mxu0 0.0
        %1089 = vmatpush1.msra.mxu0 0.0
        %1090 = vmatprep.subr.mxu0 0.0
        %1091 = vmatpush1.msra.mxu0 0.0
        %1092 = vmatprep.subr.mxu0 0.0
        %1093 = vmatpush1.msra.mxu0 0.0
        %1094 = vmatprep.subr.mxu0 0.0
        %1095 = vmatpush1.msra.mxu0 0.0
        %1096 = vmatprep.subr.mxu0 0.0
        %1097 = vmatpush1.msra.mxu0 0.0
        %1098 = vmatprep.subr.mxu0 0.0
        %1099 = vmatpush1.msra.mxu0 0.0
        %1100 = vmatprep.subr.mxu0 0.0
        %1101 = vmatpush1.msra.mxu0 0.0
        %1102 = vmatprep.subr.mxu0 0.0
        %1103 = vmatpush1.msra.mxu0 0.0
        %1104 = vmatprep.subr.mxu0 0.0
        %1105 = vmatpush1.msra.mxu0 0.0
        %1106 = vmatprep.subr.mxu0 0.0
        %1107 = vmatpush1.msra.mxu0 0.0
        %1108 = vmatprep.subr.mxu0 0.0
        %1109 = vmatpush1.msra.mxu0 0.0
        %1110 = vmatprep.subr.mxu0 0.0
        %1111 = vmatpush1.msra.mxu0 0.0
        %1112 = vmatprep.mubr.f32.mxu0 0.0
        %1113 = vmatmul.mubr.f32.gmra.mrb[0].mxu0 %v963
        %v1114 = vpop.f32.mrb[0].mxu0
        %v1115 = vadd.f32 %v960, %v1114
        %v1116 = vpop.f32.mrb[0].mxu0
        %v1117 = vadd.f32 %v960, %v1116
        %1118 = vdwg.mxu0
        %v1121 = vcombine.low %v1038, %v1040
        %v1123 = vunpack.c.l.s4 1966171168
        %v1124 = vunpack.c.0.s8 %v1123
        %v1125 = vlaneseq
        %v1126 = vshrl.u32 %v1125, 7
        %v1127 = vsub.s32 %v1124, %v1126
        %v1128 = vrot.slane %v1121, %v1127
        %v1130 = vunpack.c.l.s4 1966171168
        %v1131 = vunpack.c.0.s8 %v1130
        %v1132 = vlaneseq
        %v1133 = vshrl.u32 %v1132, 7
        %v1134 = vsub.s32 %v1131, %v1133
        %v1135 = vrot.slane %v1128, %v1134
        %v1137 = vlaneseq
        %vm1138 = vcmp.ge.s32.totalorder %v1137, 0
        %vm1139 = vcmp.lt.s32.totalorder %v1137, 256
        %vm1140 = vmand %vm1138, %vm1139
        %1141 = vst.msk [vmem:[%s186] sm:$0x3] %vm1140, %v1135
        %v1144 = vcombine.low %v1115, %v1117
        %v1146 = vunpack.c.l.s4 1966171168
        %v1147 = vunpack.c.0.s8 %v1146
        %v1148 = vlaneseq
        %v1149 = vshrl.u32 %v1148, 7
        %v1150 = vsub.s32 %v1147, %v1149
        %v1151 = vrot.slane %v1144, %v1150
        %v1153 = vunpack.c.l.s4 1966171168
        %v1154 = vunpack.c.0.s8 %v1153
        %v1155 = vlaneseq
        %v1156 = vshrl.u32 %v1155, 7
        %v1157 = vsub.s32 %v1154, %v1156
        %v1158 = vrot.slane %v1151, %v1157
        %1160 = vst.msk [vmem:[%s186 + $0x2] sm:$0x3] %vm1140, %v1158
        %v1161 = vld [vmem:[%s164 + $0x4] sm:$0x3]
        %v1162 = vld [vmem:[%s164 + $0x6] sm:$0x3]
        %v1164 = vlaneseq
        %v1165 = vshrl.u32 %v1164, 7
        %v1166 = vsub.s32 0, %v1165
        %v1167 = vrot.slane %v1161, %v1166
        %v1168 = vlaneseq
        %v1169 = vshrl.u32 %v1168, 7
        %v1170 = vsub.s32 1, %v1169
        %v1171 = vrot.slane %v1161, %v1170
        %v1174 = vmul.f32 %v228, %v1167
        %v1175 = vmul.f32 %v228, %v1171
        %v1176 = vmul.f32 %v233, %v1167
        %v1177 = vmul.f32 %v233, %v1171
        %v1178 = vmul.f32 %v238, %v1167
        %v1179 = vmul.f32 %v238, %v1171
        %v1180 = vadd.f32 %v1174, %v260
        %v1181 = vadd.f32 %v1175, %v260
        %v1182 = vadd.f32 %v1176, %v265
        %v1183 = vadd.f32 %v1177, %v265
        %v1184 = vadd.f32 %v1178, %v270
        %v1185 = vadd.f32 %v1179, %v270
        %v1186 = vtanh.pop %v1180
        %v1187 = vtanh.pop %v1181
        %v1188 = vtanh.pop %v1182
        %v1189 = vtanh.pop %v1183
        %v1190 = vtanh.pop %v1184
        %v1191 = vtanh.pop %v1185
        %v1193 = vlaneseq
        %v1194 = vshrl.u32 %v1193, 7
        %v1195 = vsub.s32 0, %v1194
        %v1196 = vrot.slane %v1162, %v1195
        %v1197 = vlaneseq
        %v1198 = vshrl.u32 %v1197, 7
        %v1199 = vsub.s32 1, %v1198
        %v1200 = vrot.slane %v1162, %v1199
        %v1203 = vmul.f32 %v228, %v1196
        %v1204 = vmul.f32 %v228, %v1200
        %v1205 = vmul.f32 %v233, %v1196
        %v1206 = vmul.f32 %v233, %v1200
        %v1207 = vmul.f32 %v238, %v1196
        %v1208 = vmul.f32 %v238, %v1200
        %v1209 = vadd.f32 %v1203, %v260
        %v1210 = vadd.f32 %v1204, %v260
        %v1211 = vadd.f32 %v1205, %v265
        %v1212 = vadd.f32 %v1206, %v265
        %v1213 = vadd.f32 %v1207, %v270
        %v1214 = vadd.f32 %v1208, %v270
        %v1215 = vtanh.pop %v1209
        %v1216 = vtanh.pop %v1210
        %v1217 = vtanh.pop %v1211
        %v1218 = vtanh.pop %v1212
        %v1219 = vtanh.pop %v1213
        %v1220 = vtanh.pop %v1214
        %v1222 = vsel %vm338, %v1190, 0
        %v1225 = vsel %vm338, %v1191, 0
        %1227 = vmatprep.subr.mxu0 %v1187
        %1228 = vmatpush1.msra.mxu0 %v1186
        %1229 = vmatprep.subr.mxu0 %v1189
        %1230 = vmatpush1.msra.mxu0 %v1188
        %1231 = vmatprep.subr.mxu0 %v1225
        %1232 = vmatpush1.msra.mxu0 %v1222
        %1233 = vmatprep.subr.mxu0 0.0
        %1234 = vmatpush1.msra.mxu0 0.0
        %1235 = vmatprep.subr.mxu0 0.0
        %1236 = vmatpush1.msra.mxu0 0.0
        %1237 = vmatprep.subr.mxu0 0.0
        %1238 = vmatpush1.msra.mxu0 0.0
        %1239 = vmatprep.subr.mxu0 0.0
        %1240 = vmatpush1.msra.mxu0 0.0
        %1241 = vmatprep.subr.mxu0 0.0
        %1242 = vmatpush1.msra.mxu0 0.0
        %1243 = vmatprep.subr.mxu0 0.0
        %1244 = vmatpush1.msra.mxu0 0.0
        %1245 = vmatprep.subr.mxu0 0.0
        %1246 = vmatpush1.msra.mxu0 0.0
        %1247 = vmatprep.subr.mxu0 0.0
        %1248 = vmatpush1.msra.mxu0 0.0
        %1249 = vmatprep.subr.mxu0 0.0
        %1250 = vmatpush1.msra.mxu0 0.0
        %1251 = vmatprep.subr.mxu0 0.0
        %1252 = vmatpush1.msra.mxu0 0.0
        %1253 = vmatprep.subr.mxu0 0.0
        %1254 = vmatpush1.msra.mxu0 0.0
        %1255 = vmatprep.subr.mxu0 0.0
        %1256 = vmatpush1.msra.mxu0 0.0
        %1257 = vmatprep.subr.mxu0 0.0
        %1258 = vmatpush1.msra.mxu0 0.0
        %1259 = vmatprep.subr.mxu0 0.0
        %1260 = vmatpush1.msra.mxu0 0.0
        %1261 = vmatprep.subr.mxu0 0.0
        %1262 = vmatpush1.msra.mxu0 0.0
        %1263 = vmatprep.subr.mxu0 0.0
        %1264 = vmatpush1.msra.mxu0 0.0
        %1265 = vmatprep.subr.mxu0 0.0
        %1266 = vmatpush1.msra.mxu0 0.0
        %1267 = vmatprep.subr.mxu0 0.0
        %1268 = vmatpush1.msra.mxu0 0.0
        %1269 = vmatprep.subr.mxu0 0.0
        %1270 = vmatpush1.msra.mxu0 0.0
        %1271 = vmatprep.subr.mxu0 0.0
        %1272 = vmatpush1.msra.mxu0 0.0
        %1273 = vmatprep.subr.mxu0 0.0
        %1274 = vmatpush1.msra.mxu0 0.0
        %1275 = vmatprep.subr.mxu0 0.0
        %1276 = vmatpush1.msra.mxu0 0.0
        %1277 = vmatprep.subr.mxu0 0.0
        %1278 = vmatpush1.msra.mxu0 0.0
        %1279 = vmatprep.subr.mxu0 0.0
        %1280 = vmatpush1.msra.mxu0 0.0
        %1281 = vmatprep.subr.mxu0 0.0
        %1282 = vmatpush1.msra.mxu0 0.0
        %1283 = vmatprep.subr.mxu0 0.0
        %1284 = vmatpush1.msra.mxu0 0.0
        %1285 = vmatprep.subr.mxu0 0.0
        %1286 = vmatpush1.msra.mxu0 0.0
        %1287 = vmatprep.subr.mxu0 0.0
        %1288 = vmatpush1.msra.mxu0 0.0
        %1289 = vmatprep.subr.mxu0 0.0
        %1290 = vmatpush1.msra.mxu0 0.0
        %1291 = vmatprep.mubr.f32.mxu0 0.0
        %1292 = vmatmul.mubr.f32.gmra.mrb[0].mxu0 %v330
        %v1293 = vpop.f32.mrb[0].mxu0
        %v1294 = vadd.f32 %v316, %v1293
        %v1295 = vpop.f32.mrb[0].mxu0
        %v1296 = vadd.f32 %v316, %v1295
        %1297 = vmatprep.mubr.f32.mxu0 0.0
        %1298 = vmatmul.mubr.f32.gmra.mrb[0].mxu0 %v333
        %v1299 = vpop.f32.mrb[0].mxu0
        %v1300 = vadd.f32 %v321, %v1299
        %v1301 = vpop.f32.mrb[0].mxu0
        %v1302 = vadd.f32 %v321, %v1301
        %1303 = vmatprep.mubr.f32.mxu0 0.0
        %1304 = vmatmul.mubr.f32.gmra.mrb[0].mxu0 %v336
        %v1305 = vpop.f32.mrb[0].mxu0
        %v1306 = vadd.f32 %v326, %v1305
        %v1307 = vpop.f32.mrb[0].mxu0
        %v1308 = vadd.f32 %v326, %v1307
        %1309 = vdwg.mxu0
        %v1310 = vtanh.pop %v1294
        %v1311 = vtanh.pop %v1296
        %v1312 = vtanh.pop %v1300
        %v1313 = vtanh.pop %v1302
        %v1314 = vtanh.pop %v1306
        %v1315 = vtanh.pop %v1308
        %v1317 = vsel %vm338, %v1219, 0
        %v1320 = vsel %vm338, %v1220, 0
        %1322 = vmatprep.subr.mxu0 %v1216
        %1323 = vmatpush1.msra.mxu0 %v1215
        %1324 = vmatprep.subr.mxu0 %v1218
        %1325 = vmatpush1.msra.mxu0 %v1217
        %1326 = vmatprep.subr.mxu0 %v1320
        %1327 = vmatpush1.msra.mxu0 %v1317
        %1328 = vmatprep.subr.mxu0 0.0
        %1329 = vmatpush1.msra.mxu0 0.0
        %1330 = vmatprep.subr.mxu0 0.0
        %1331 = vmatpush1.msra.mxu0 0.0
        %1332 = vmatprep.subr.mxu0 0.0
        %1333 = vmatpush1.msra.mxu0 0.0
        %1334 = vmatprep.subr.mxu0 0.0
        %1335 = vmatpush1.msra.mxu0 0.0
        %1336 = vmatprep.subr.mxu0 0.0
        %1337 = vmatpush1.msra.mxu0 0.0
        %1338 = vmatprep.subr.mxu0 0.0
        %1339 = vmatpush1.msra.mxu0 0.0
        %1340 = vmatprep.subr.mxu0 0.0
        %1341 = vmatpush1.msra.mxu0 0.0
        %1342 = vmatprep.subr.mxu0 0.0
        %1343 = vmatpush1.msra.mxu0 0.0
        %1344 = vmatprep.subr.mxu0 0.0
        %1345 = vmatpush1.msra.mxu0 0.0
        %1346 = vmatprep.subr.mxu0 0.0
        %1347 = vmatpush1.msra.mxu0 0.0
        %1348 = vmatprep.subr.mxu0 0.0
        %1349 = vmatpush1.msra.mxu0 0.0
        %1350 = vmatprep.subr.mxu0 0.0
        %1351 = vmatpush1.msra.mxu0 0.0
        %1352 = vmatprep.subr.mxu0 0.0
        %1353 = vmatpush1.msra.mxu0 0.0
        %1354 = vmatprep.subr.mxu0 0.0
        %1355 = vmatpush1.msra.mxu0 0.0
        %1356 = vmatprep.subr.mxu0 0.0
        %1357 = vmatpush1.msra.mxu0 0.0
        %1358 = vmatprep.subr.mxu0 0.0
        %1359 = vmatpush1.msra.mxu0 0.0
        %1360 = vmatprep.subr.mxu0 0.0
        %1361 = vmatpush1.msra.mxu0 0.0
        %1362 = vmatprep.subr.mxu0 0.0
        %1363 = vmatpush1.msra.mxu0 0.0
        %1364 = vmatprep.subr.mxu0 0.0
        %1365 = vmatpush1.msra.mxu0 0.0
        %1366 = vmatprep.subr.mxu0 0.0
        %1367 = vmatpush1.msra.mxu0 0.0
        %1368 = vmatprep.subr.mxu0 0.0
        %1369 = vmatpush1.msra.mxu0 0.0
        %1370 = vmatprep.subr.mxu0 0.0
        %1371 = vmatpush1.msra.mxu0 0.0
        %1372 = vmatprep.subr.mxu0 0.0
        %1373 = vmatpush1.msra.mxu0 0.0
        %1374 = vmatprep.subr.mxu0 0.0
        %1375 = vmatpush1.msra.mxu0 0.0
        %1376 = vmatprep.subr.mxu0 0.0
        %1377 = vmatpush1.msra.mxu0 0.0
        %1378 = vmatprep.subr.mxu0 0.0
        %1379 = vmatpush1.msra.mxu0 0.0
        %1380 = vmatprep.subr.mxu0 0.0
        %1381 = vmatpush1.msra.mxu0 0.0
        %1382 = vmatprep.subr.mxu0 0.0
        %1383 = vmatpush1.msra.mxu0 0.0
        %1384 = vmatprep.subr.mxu0 0.0
        %1385 = vmatpush1.msra.mxu0 0.0
        %1386 = vmatprep.mubr.f32.mxu0 0.0
        %1387 = vmatmul.mubr.f32.gmra.mrb[0].mxu0 %v330
        %v1388 = vpop.f32.mrb[0].mxu0
        %v1389 = vadd.f32 %v316, %v1388
        %v1390 = vpop.f32.mrb[0].mxu0
        %v1391 = vadd.f32 %v316, %v1390
        %1392 = vmatprep.mubr.f32.mxu0 0.0
        %1393 = vmatmul.mubr.f32.gmra.mrb[0].mxu0 %v333
        %v1394 = vpop.f32.mrb[0].mxu0
        %v1395 = vadd.f32 %v321, %v1394
        %v1396 = vpop.f32.mrb[0].mxu0
        %v1397 = vadd.f32 %v321, %v1396
        %1398 = vmatprep.mubr.f32.mxu0 0.0
        %1399 = vmatmul.mubr.f32.gmra.mrb[0].mxu0 %v336
        %v1400 = vpop.f32.mrb[0].mxu0
        %v1401 = vadd.f32 %v326, %v1400
        %v1402 = vpop.f32.mrb[0].mxu0
        %v1403 = vadd.f32 %v326, %v1402
        %1404 = vdwg.mxu0
        %v1405 = vtanh.pop %v1389
        %v1406 = vtanh.pop %v1391
        %v1407 = vtanh.pop %v1395
        %v1408 = vtanh.pop %v1397
        %v1409 = vtanh.pop %v1401
        %v1410 = vtanh.pop %v1403
        %v1412 = vsel %vm338, %v1314, 0
        %v1415 = vsel %vm338, %v1315, 0
        %1417 = vmatprep.subr.mxu0 %v1311
        %1418 = vmatpush1.msra.mxu0 %v1310
        %1419 = vmatprep.subr.mxu0 %v1313
        %1420 = vmatpush1.msra.mxu0 %v1312
        %1421 = vmatprep.subr.mxu0 %v1415
        %1422 = vmatpush1.msra.mxu0 %v1412
        %1423 = vmatprep.subr.mxu0 0.0
        %1424 = vmatpush1.msra.mxu0 0.0
        %1425 = vmatprep.subr.mxu0 0.0
        %1426 = vmatpush1.msra.mxu0 0.0
        %1427 = vmatprep.subr.mxu0 0.0
        %1428 = vmatpush1.msra.mxu0 0.0
        %1429 = vmatprep.subr.mxu0 0.0
        %1430 = vmatpush1.msra.mxu0 0.0
        %1431 = vmatprep.subr.mxu0 0.0
        %1432 = vmatpush1.msra.mxu0 0.0
        %1433 = vmatprep.subr.mxu0 0.0
        %1434 = vmatpush1.msra.mxu0 0.0
        %1435 = vmatprep.subr.mxu0 0.0
        %1436 = vmatpush1.msra.mxu0 0.0
        %1437 = vmatprep.subr.mxu0 0.0
        %1438 = vmatpush1.msra.mxu0 0.0
        %1439 = vmatprep.subr.mxu0 0.0
        %1440 = vmatpush1.msra.mxu0 0.0
        %1441 = vmatprep.subr.mxu0 0.0
        %1442 = vmatpush1.msra.mxu0 0.0
        %1443 = vmatprep.subr.mxu0 0.0
        %1444 = vmatpush1.msra.mxu0 0.0
        %1445 = vmatprep.subr.mxu0 0.0
        %1446 = vmatpush1.msra.mxu0 0.0
        %1447 = vmatprep.subr.mxu0 0.0
        %1448 = vmatpush1.msra.mxu0 0.0
        %1449 = vmatprep.subr.mxu0 0.0
        %1450 = vmatpush1.msra.mxu0 0.0
        %1451 = vmatprep.subr.mxu0 0.0
        %1452 = vmatpush1.msra.mxu0 0.0
        %1453 = vmatprep.subr.mxu0 0.0
        %1454 = vmatpush1.msra.mxu0 0.0
        %1455 = vmatprep.subr.mxu0 0.0
        %1456 = vmatpush1.msra.mxu0 0.0
        %1457 = vmatprep.subr.mxu0 0.0
        %1458 = vmatpush1.msra.mxu0 0.0
        %1459 = vmatprep.subr.mxu0 0.0
        %1460 = vmatpush1.msra.mxu0 0.0
        %1461 = vmatprep.subr.mxu0 0.0
        %1462 = vmatpush1.msra.mxu0 0.0
        %1463 = vmatprep.subr.mxu0 0.0
        %1464 = vmatpush1.msra.mxu0 0.0
        %1465 = vmatprep.subr.mxu0 0.0
        %1466 = vmatpush1.msra.mxu0 0.0
        %1467 = vmatprep.subr.mxu0 0.0
        %1468 = vmatpush1.msra.mxu0 0.0
        %1469 = vmatprep.subr.mxu0 0.0
        %1470 = vmatpush1.msra.mxu0 0.0
        %1471 = vmatprep.subr.mxu0 0.0
        %1472 = vmatpush1.msra.mxu0 0.0
        %1473 = vmatprep.subr.mxu0 0.0
        %1474 = vmatpush1.msra.mxu0 0.0
        %1475 = vmatprep.subr.mxu0 0.0
        %1476 = vmatpush1.msra.mxu0 0.0
        %1477 = vmatprep.subr.mxu0 0.0
        %1478 = vmatpush1.msra.mxu0 0.0
        %1479 = vmatprep.subr.mxu0 0.0
        %1480 = vmatpush1.msra.mxu0 0.0
        %1481 = vmatprep.mubr.f32.mxu0 0.0
        %1482 = vmatmul.mubr.f32.gmra.mrb[0].mxu0 %v545
        %v1483 = vpop.f32.mrb[0].mxu0
        %v1484 = vadd.f32 %v532, %v1483
        %v1485 = vpop.f32.mrb[0].mxu0
        %v1486 = vadd.f32 %v532, %v1485
        %1487 = vmatprep.mubr.f32.mxu0 0.0
        %1488 = vmatmul.mubr.f32.gmra.mrb[0].mxu0 %v548
        %v1489 = vpop.f32.mrb[0].mxu0
        %v1490 = vadd.f32 %v537, %v1489
        %v1491 = vpop.f32.mrb[0].mxu0
        %v1492 = vadd.f32 %v537, %v1491
        %1493 = vmatprep.mubr.f32.mxu0 0.0
        %1494 = vmatmul.mubr.f32.gmra.mrb[0].mxu0 %v551
        %v1495 = vpop.f32.mrb[0].mxu0
        %v1496 = vadd.f32 %v542, %v1495
        %v1497 = vpop.f32.mrb[0].mxu0
        %v1498 = vadd.f32 %v542, %v1497
        %1499 = vdwg.mxu0
        %v1500 = vtanh.pop %v1484
        %v1501 = vtanh.pop %v1486
        %v1502 = vtanh.pop %v1490
        %v1503 = vtanh.pop %v1492
        %v1504 = vtanh.pop %v1496
        %v1505 = vtanh.pop %v1498
        %v1507 = vsel %vm338, %v1409, 0
        %v1510 = vsel %vm338, %v1410, 0
        %1512 = vmatprep.subr.mxu0 %v1406
        %1513 = vmatpush1.msra.mxu0 %v1405
        %1514 = vmatprep.subr.mxu0 %v1408
        %1515 = vmatpush1.msra.mxu0 %v1407
        %1516 = vmatprep.subr.mxu0 %v1510
        %1517 = vmatpush1.msra.mxu0 %v1507
        %1518 = vmatprep.subr.mxu0 0.0
        %1519 = vmatpush1.msra.mxu0 0.0
        %1520 = vmatprep.subr.mxu0 0.0
        %1521 = vmatpush1.msra.mxu0 0.0
        %1522 = vmatprep.subr.mxu0 0.0
        %1523 = vmatpush1.msra.mxu0 0.0
        %1524 = vmatprep.subr.mxu0 0.0
        %1525 = vmatpush1.msra.mxu0 0.0
        %1526 = vmatprep.subr.mxu0 0.0
        %1527 = vmatpush1.msra.mxu0 0.0
        %1528 = vmatprep.subr.mxu0 0.0
        %1529 = vmatpush1.msra.mxu0 0.0
        %1530 = vmatprep.subr.mxu0 0.0
        %1531 = vmatpush1.msra.mxu0 0.0
        %1532 = vmatprep.subr.mxu0 0.0
        %1533 = vmatpush1.msra.mxu0 0.0
        %1534 = vmatprep.subr.mxu0 0.0
        %1535 = vmatpush1.msra.mxu0 0.0
        %1536 = vmatprep.subr.mxu0 0.0
        %1537 = vmatpush1.msra.mxu0 0.0
        %1538 = vmatprep.subr.mxu0 0.0
        %1539 = vmatpush1.msra.mxu0 0.0
        %1540 = vmatprep.subr.mxu0 0.0
        %1541 = vmatpush1.msra.mxu0 0.0
        %1542 = vmatprep.subr.mxu0 0.0
        %1543 = vmatpush1.msra.mxu0 0.0
        %1544 = vmatprep.subr.mxu0 0.0
        %1545 = vmatpush1.msra.mxu0 0.0
        %1546 = vmatprep.subr.mxu0 0.0
        %1547 = vmatpush1.msra.mxu0 0.0
        %1548 = vmatprep.subr.mxu0 0.0
        %1549 = vmatpush1.msra.mxu0 0.0
        %1550 = vmatprep.subr.mxu0 0.0
        %1551 = vmatpush1.msra.mxu0 0.0
        %1552 = vmatprep.subr.mxu0 0.0
        %1553 = vmatpush1.msra.mxu0 0.0
        %1554 = vmatprep.subr.mxu0 0.0
        %1555 = vmatpush1.msra.mxu0 0.0
        %1556 = vmatprep.subr.mxu0 0.0
        %1557 = vmatpush1.msra.mxu0 0.0
        %1558 = vmatprep.subr.mxu0 0.0
        %1559 = vmatpush1.msra.mxu0 0.0
        %1560 = vmatprep.subr.mxu0 0.0
        %1561 = vmatpush1.msra.mxu0 0.0
        %1562 = vmatprep.subr.mxu0 0.0
        %1563 = vmatpush1.msra.mxu0 0.0
        %1564 = vmatprep.subr.mxu0 0.0
        %1565 = vmatpush1.msra.mxu0 0.0
        %1566 = vmatprep.subr.mxu0 0.0
        %1567 = vmatpush1.msra.mxu0 0.0
        %1568 = vmatprep.subr.mxu0 0.0
        %1569 = vmatpush1.msra.mxu0 0.0
        %1570 = vmatprep.subr.mxu0 0.0
        %1571 = vmatpush1.msra.mxu0 0.0
        %1572 = vmatprep.subr.mxu0 0.0
        %1573 = vmatpush1.msra.mxu0 0.0
        %1574 = vmatprep.subr.mxu0 0.0
        %1575 = vmatpush1.msra.mxu0 0.0
        %1576 = vmatprep.mubr.f32.mxu0 0.0
        %1577 = vmatmul.mubr.f32.gmra.mrb[0].mxu0 %v545
        %v1578 = vpop.f32.mrb[0].mxu0
        %v1579 = vadd.f32 %v532, %v1578
        %v1580 = vpop.f32.mrb[0].mxu0
        %v1581 = vadd.f32 %v532, %v1580
        %1582 = vmatprep.mubr.f32.mxu0 0.0
        %1583 = vmatmul.mubr.f32.gmra.mrb[0].mxu0 %v548
        %v1584 = vpop.f32.mrb[0].mxu0
        %v1585 = vadd.f32 %v537, %v1584
        %v1586 = vpop.f32.mrb[0].mxu0
        %v1587 = vadd.f32 %v537, %v1586
        %1588 = vmatprep.mubr.f32.mxu0 0.0
        %1589 = vmatmul.mubr.f32.gmra.mrb[0].mxu0 %v551
        %v1590 = vpop.f32.mrb[0].mxu0
        %v1591 = vadd.f32 %v542, %v1590
        %v1592 = vpop.f32.mrb[0].mxu0
        %v1593 = vadd.f32 %v542, %v1592
        %1594 = vdwg.mxu0
        %v1595 = vtanh.pop %v1579
        %v1596 = vtanh.pop %v1581
        %v1597 = vtanh.pop %v1585
        %v1598 = vtanh.pop %v1587
        %v1599 = vtanh.pop %v1591
        %v1600 = vtanh.pop %v1593
        %v1602 = vsel %vm338, %v1504, 0
        %v1605 = vsel %vm338, %v1505, 0
        %1607 = vmatprep.subr.mxu0 %v1501
        %1608 = vmatpush1.msra.mxu0 %v1500
        %1609 = vmatprep.subr.mxu0 %v1503
        %1610 = vmatpush1.msra.mxu0 %v1502
        %1611 = vmatprep.subr.mxu0 %v1605
        %1612 = vmatpush1.msra.mxu0 %v1602
        %1613 = vmatprep.subr.mxu0 0.0
        %1614 = vmatpush1.msra.mxu0 0.0
        %1615 = vmatprep.subr.mxu0 0.0
        %1616 = vmatpush1.msra.mxu0 0.0
        %1617 = vmatprep.subr.mxu0 0.0
        %1618 = vmatpush1.msra.mxu0 0.0
        %1619 = vmatprep.subr.mxu0 0.0
        %1620 = vmatpush1.msra.mxu0 0.0
        %1621 = vmatprep.subr.mxu0 0.0
        %1622 = vmatpush1.msra.mxu0 0.0
        %1623 = vmatprep.subr.mxu0 0.0
        %1624 = vmatpush1.msra.mxu0 0.0
        %1625 = vmatprep.subr.mxu0 0.0
        %1626 = vmatpush1.msra.mxu0 0.0
        %1627 = vmatprep.subr.mxu0 0.0
        %1628 = vmatpush1.msra.mxu0 0.0
        %1629 = vmatprep.subr.mxu0 0.0
        %1630 = vmatpush1.msra.mxu0 0.0
        %1631 = vmatprep.subr.mxu0 0.0
        %1632 = vmatpush1.msra.mxu0 0.0
        %1633 = vmatprep.subr.mxu0 0.0
        %1634 = vmatpush1.msra.mxu0 0.0
        %1635 = vmatprep.subr.mxu0 0.0
        %1636 = vmatpush1.msra.mxu0 0.0
        %1637 = vmatprep.subr.mxu0 0.0
        %1638 = vmatpush1.msra.mxu0 0.0
        %1639 = vmatprep.subr.mxu0 0.0
        %1640 = vmatpush1.msra.mxu0 0.0
        %1641 = vmatprep.subr.mxu0 0.0
        %1642 = vmatpush1.msra.mxu0 0.0
        %1643 = vmatprep.subr.mxu0 0.0
        %1644 = vmatpush1.msra.mxu0 0.0
        %1645 = vmatprep.subr.mxu0 0.0
        %1646 = vmatpush1.msra.mxu0 0.0
        %1647 = vmatprep.subr.mxu0 0.0
        %1648 = vmatpush1.msra.mxu0 0.0
        %1649 = vmatprep.subr.mxu0 0.0
        %1650 = vmatpush1.msra.mxu0 0.0
        %1651 = vmatprep.subr.mxu0 0.0
        %1652 = vmatpush1.msra.mxu0 0.0
        %1653 = vmatprep.subr.mxu0 0.0
        %1654 = vmatpush1.msra.mxu0 0.0
        %1655 = vmatprep.subr.mxu0 0.0
        %1656 = vmatpush1.msra.mxu0 0.0
        %1657 = vmatprep.subr.mxu0 0.0
        %1658 = vmatpush1.msra.mxu0 0.0
        %1659 = vmatprep.subr.mxu0 0.0
        %1660 = vmatpush1.msra.mxu0 0.0
        %1661 = vmatprep.subr.mxu0 0.0
        %1662 = vmatpush1.msra.mxu0 0.0
        %1663 = vmatprep.subr.mxu0 0.0
        %1664 = vmatpush1.msra.mxu0 0.0
        %1665 = vmatprep.subr.mxu0 0.0
        %1666 = vmatpush1.msra.mxu0 0.0
        %1667 = vmatprep.subr.mxu0 0.0
        %1668 = vmatpush1.msra.mxu0 0.0
        %1669 = vmatprep.subr.mxu0 0.0
        %1670 = vmatpush1.msra.mxu0 0.0
        %1671 = vmatprep.mubr.f32.mxu0 0.0
        %1672 = vmatmul.mubr.f32.gmra.mrb[0].mxu0 %v759
        %v1673 = vpop.f32.mrb[0].mxu0
        %v1674 = vadd.f32 %v746, %v1673
        %v1675 = vpop.f32.mrb[0].mxu0
        %v1676 = vadd.f32 %v746, %v1675
        %1677 = vmatprep.mubr.f32.mxu0 0.0
        %1678 = vmatmul.mubr.f32.gmra.mrb[0].mxu0 %v762
        %v1679 = vpop.f32.mrb[0].mxu0
        %v1680 = vadd.f32 %v751, %v1679
        %v1681 = vpop.f32.mrb[0].mxu0
        %v1682 = vadd.f32 %v751, %v1681
        %1683 = vmatprep.mubr.f32.mxu0 0.0
        %1684 = vmatmul.mubr.f32.gmra.mrb[0].mxu0 %v765
        %v1685 = vpop.f32.mrb[0].mxu0
        %v1686 = vadd.f32 %v756, %v1685
        %v1687 = vpop.f32.mrb[0].mxu0
        %v1688 = vadd.f32 %v756, %v1687
        %1689 = vdwg.mxu0
        %v1690 = vtanh.pop %v1674
        %v1691 = vtanh.pop %v1676
        %v1692 = vtanh.pop %v1680
        %v1693 = vtanh.pop %v1682
        %v1694 = vtanh.pop %v1686
        %v1695 = vtanh.pop %v1688
        %v1697 = vsel %vm338, %v1599, 0
        %v1700 = vsel %vm338, %v1600, 0
        %1702 = vmatprep.subr.mxu0 %v1596
        %1703 = vmatpush1.msra.mxu0 %v1595
        %1704 = vmatprep.subr.mxu0 %v1598
        %1705 = vmatpush1.msra.mxu0 %v1597
        %1706 = vmatprep.subr.mxu0 %v1700
        %1707 = vmatpush1.msra.mxu0 %v1697
        %1708 = vmatprep.subr.mxu0 0.0
        %1709 = vmatpush1.msra.mxu0 0.0
        %1710 = vmatprep.subr.mxu0 0.0
        %1711 = vmatpush1.msra.mxu0 0.0
        %1712 = vmatprep.subr.mxu0 0.0
        %1713 = vmatpush1.msra.mxu0 0.0
        %1714 = vmatprep.subr.mxu0 0.0
        %1715 = vmatpush1.msra.mxu0 0.0
        %1716 = vmatprep.subr.mxu0 0.0
        %1717 = vmatpush1.msra.mxu0 0.0
        %1718 = vmatprep.subr.mxu0 0.0
        %1719 = vmatpush1.msra.mxu0 0.0
        %1720 = vmatprep.subr.mxu0 0.0
        %1721 = vmatpush1.msra.mxu0 0.0
        %1722 = vmatprep.subr.mxu0 0.0
        %1723 = vmatpush1.msra.mxu0 0.0
        %1724 = vmatprep.subr.mxu0 0.0
        %1725 = vmatpush1.msra.mxu0 0.0
        %1726 = vmatprep.subr.mxu0 0.0
        %1727 = vmatpush1.msra.mxu0 0.0
        %1728 = vmatprep.subr.mxu0 0.0
        %1729 = vmatpush1.msra.mxu0 0.0
        %1730 = vmatprep.subr.mxu0 0.0
        %1731 = vmatpush1.msra.mxu0 0.0
        %1732 = vmatprep.subr.mxu0 0.0
        %1733 = vmatpush1.msra.mxu0 0.0
        %1734 = vmatprep.subr.mxu0 0.0
        %1735 = vmatpush1.msra.mxu0 0.0
        %1736 = vmatprep.subr.mxu0 0.0
        %1737 = vmatpush1.msra.mxu0 0.0
        %1738 = vmatprep.subr.mxu0 0.0
        %1739 = vmatpush1.msra.mxu0 0.0
        %1740 = vmatprep.subr.mxu0 0.0
        %1741 = vmatpush1.msra.mxu0 0.0
        %1742 = vmatprep.subr.mxu0 0.0
        %1743 = vmatpush1.msra.mxu0 0.0
        %1744 = vmatprep.subr.mxu0 0.0
        %1745 = vmatpush1.msra.mxu0 0.0
        %1746 = vmatprep.subr.mxu0 0.0
        %1747 = vmatpush1.msra.mxu0 0.0
        %1748 = vmatprep.subr.mxu0 0.0
        %1749 = vmatpush1.msra.mxu0 0.0
        %1750 = vmatprep.subr.mxu0 0.0
        %1751 = vmatpush1.msra.mxu0 0.0
        %1752 = vmatprep.subr.mxu0 0.0
        %1753 = vmatpush1.msra.mxu0 0.0
        %1754 = vmatprep.subr.mxu0 0.0
        %1755 = vmatpush1.msra.mxu0 0.0
        %1756 = vmatprep.subr.mxu0 0.0
        %1757 = vmatpush1.msra.mxu0 0.0
        %1758 = vmatprep.subr.mxu0 0.0
        %1759 = vmatpush1.msra.mxu0 0.0
        %1760 = vmatprep.subr.mxu0 0.0
        %1761 = vmatpush1.msra.mxu0 0.0
        %1762 = vmatprep.subr.mxu0 0.0
        %1763 = vmatpush1.msra.mxu0 0.0
        %1764 = vmatprep.subr.mxu0 0.0
        %1765 = vmatpush1.msra.mxu0 0.0
        %1766 = vmatprep.mubr.f32.mxu0 0.0
        %1767 = vmatmul.mubr.f32.gmra.mrb[0].mxu0 %v759
        %v1768 = vpop.f32.mrb[0].mxu0
        %v1769 = vadd.f32 %v746, %v1768
        %v1770 = vpop.f32.mrb[0].mxu0
        %v1771 = vadd.f32 %v746, %v1770
        %1772 = vmatprep.mubr.f32.mxu0 0.0
        %1773 = vmatmul.mubr.f32.gmra.mrb[0].mxu0 %v762
        %v1774 = vpop.f32.mrb[0].mxu0
        %v1775 = vadd.f32 %v751, %v1774
        %v1776 = vpop.f32.mrb[0].mxu0
        %v1777 = vadd.f32 %v751, %v1776
        %1778 = vmatprep.mubr.f32.mxu0 0.0
        %1779 = vmatmul.mubr.f32.gmra.mrb[0].mxu0 %v765
        %v1780 = vpop.f32.mrb[0].mxu0
        %v1781 = vadd.f32 %v756, %v1780
        %v1782 = vpop.f32.mrb[0].mxu0
        %v1783 = vadd.f32 %v756, %v1782
        %1784 = vdwg.mxu0
        %v1785 = vtanh.pop %v1769
        %v1786 = vtanh.pop %v1771
        %v1787 = vtanh.pop %v1775
        %v1788 = vtanh.pop %v1777
        %v1789 = vtanh.pop %v1781
        %v1790 = vtanh.pop %v1783
        %v1792 = vsel %vm338, %v1694, 0
        %v1795 = vsel %vm338, %v1695, 0
        %1797 = vmatprep.subr.mxu0 %v1691
        %1798 = vmatpush1.msra.mxu0 %v1690
        %1799 = vmatprep.subr.mxu0 %v1693
        %1800 = vmatpush1.msra.mxu0 %v1692
        %1801 = vmatprep.subr.mxu0 %v1795
        %1802 = vmatpush1.msra.mxu0 %v1792
        %1803 = vmatprep.subr.mxu0 0.0
        %1804 = vmatpush1.msra.mxu0 0.0
        %1805 = vmatprep.subr.mxu0 0.0
        %1806 = vmatpush1.msra.mxu0 0.0
        %1807 = vmatprep.subr.mxu0 0.0
        %1808 = vmatpush1.msra.mxu0 0.0
        %1809 = vmatprep.subr.mxu0 0.0
        %1810 = vmatpush1.msra.mxu0 0.0
        %1811 = vmatprep.subr.mxu0 0.0
        %1812 = vmatpush1.msra.mxu0 0.0
        %1813 = vmatprep.subr.mxu0 0.0
        %1814 = vmatpush1.msra.mxu0 0.0
        %1815 = vmatprep.subr.mxu0 0.0
        %1816 = vmatpush1.msra.mxu0 0.0
        %1817 = vmatprep.subr.mxu0 0.0
        %1818 = vmatpush1.msra.mxu0 0.0
        %1819 = vmatprep.subr.mxu0 0.0
        %1820 = vmatpush1.msra.mxu0 0.0
        %1821 = vmatprep.subr.mxu0 0.0
        %1822 = vmatpush1.msra.mxu0 0.0
        %1823 = vmatprep.subr.mxu0 0.0
        %1824 = vmatpush1.msra.mxu0 0.0
        %1825 = vmatprep.subr.mxu0 0.0
        %1826 = vmatpush1.msra.mxu0 0.0
        %1827 = vmatprep.subr.mxu0 0.0
        %1828 = vmatpush1.msra.mxu0 0.0
        %1829 = vmatprep.subr.mxu0 0.0
        %1830 = vmatpush1.msra.mxu0 0.0
        %1831 = vmatprep.subr.mxu0 0.0
        %1832 = vmatpush1.msra.mxu0 0.0
        %1833 = vmatprep.subr.mxu0 0.0
        %1834 = vmatpush1.msra.mxu0 0.0
        %1835 = vmatprep.subr.mxu0 0.0
        %1836 = vmatpush1.msra.mxu0 0.0
        %1837 = vmatprep.subr.mxu0 0.0
        %1838 = vmatpush1.msra.mxu0 0.0
        %1839 = vmatprep.subr.mxu0 0.0
        %1840 = vmatpush1.msra.mxu0 0.0
        %1841 = vmatprep.subr.mxu0 0.0
        %1842 = vmatpush1.msra.mxu0 0.0
        %1843 = vmatprep.subr.mxu0 0.0
        %1844 = vmatpush1.msra.mxu0 0.0
        %1845 = vmatprep.subr.mxu0 0.0
        %1846 = vmatpush1.msra.mxu0 0.0
        %1847 = vmatprep.subr.mxu0 0.0
        %1848 = vmatpush1.msra.mxu0 0.0
        %1849 = vmatprep.subr.mxu0 0.0
        %1850 = vmatpush1.msra.mxu0 0.0
        %1851 = vmatprep.subr.mxu0 0.0
        %1852 = vmatpush1.msra.mxu0 0.0
        %1853 = vmatprep.subr.mxu0 0.0
        %1854 = vmatpush1.msra.mxu0 0.0
        %1855 = vmatprep.subr.mxu0 0.0
        %1856 = vmatpush1.msra.mxu0 0.0
        %1857 = vmatprep.subr.mxu0 0.0
        %1858 = vmatpush1.msra.mxu0 0.0
        %1859 = vmatprep.subr.mxu0 0.0
        %1860 = vmatpush1.msra.mxu0 0.0
        %1861 = vmatprep.mubr.f32.mxu0 0.0
        %1862 = vmatmul.mubr.f32.gmra.mrb[0].mxu0 %v963
        %v1863 = vpop.f32.mrb[0].mxu0
        %v1864 = vadd.f32 %v960, %v1863
        %v1865 = vpop.f32.mrb[0].mxu0
        %v1866 = vadd.f32 %v960, %v1865
        %1867 = vdwg.mxu0
        %v1869 = vsel %vm338, %v1789, 0
        %v1872 = vsel %vm338, %v1790, 0
        %1874 = vmatprep.subr.mxu0 %v1786
        %1875 = vmatpush1.msra.mxu0 %v1785
        %1876 = vmatprep.subr.mxu0 %v1788
        %1877 = vmatpush1.msra.mxu0 %v1787
        %1878 = vmatprep.subr.mxu0 %v1872
        %1879 = vmatpush1.msra.mxu0 %v1869
        %1880 = vmatprep.subr.mxu0 0.0
        %1881 = vmatpush1.msra.mxu0 0.0
        %1882 = vmatprep.subr.mxu0 0.0
        %1883 = vmatpush1.msra.mxu0 0.0
        %1884 = vmatprep.subr.mxu0 0.0
        %1885 = vmatpush1.msra.mxu0 0.0
        %1886 = vmatprep.subr.mxu0 0.0
        %1887 = vmatpush1.msra.mxu0 0.0
        %1888 = vmatprep.subr.mxu0 0.0
        %1889 = vmatpush1.msra.mxu0 0.0
        %1890 = vmatprep.subr.mxu0 0.0
        %1891 = vmatpush1.msra.mxu0 0.0
        %1892 = vmatprep.subr.mxu0 0.0
        %1893 = vmatpush1.msra.mxu0 0.0
        %1894 = vmatprep.subr.mxu0 0.0
        %1895 = vmatpush1.msra.mxu0 0.0
        %1896 = vmatprep.subr.mxu0 0.0
        %1897 = vmatpush1.msra.mxu0 0.0
        %1898 = vmatprep.subr.mxu0 0.0
        %1899 = vmatpush1.msra.mxu0 0.0
        %1900 = vmatprep.subr.mxu0 0.0
        %1901 = vmatpush1.msra.mxu0 0.0
        %1902 = vmatprep.subr.mxu0 0.0
        %1903 = vmatpush1.msra.mxu0 0.0
        %1904 = vmatprep.subr.mxu0 0.0
        %1905 = vmatpush1.msra.mxu0 0.0
        %1906 = vmatprep.subr.mxu0 0.0
        %1907 = vmatpush1.msra.mxu0 0.0
        %1908 = vmatprep.subr.mxu0 0.0
        %1909 = vmatpush1.msra.mxu0 0.0
        %1910 = vmatprep.subr.mxu0 0.0
        %1911 = vmatpush1.msra.mxu0 0.0
        %1912 = vmatprep.subr.mxu0 0.0
        %1913 = vmatpush1.msra.mxu0 0.0
        %1914 = vmatprep.subr.mxu0 0.0
        %1915 = vmatpush1.msra.mxu0 0.0
        %1916 = vmatprep.subr.mxu0 0.0
        %1917 = vmatpush1.msra.mxu0 0.0
        %1918 = vmatprep.subr.mxu0 0.0
        %1919 = vmatpush1.msra.mxu0 0.0
        %1920 = vmatprep.subr.mxu0 0.0
        %1921 = vmatpush1.msra.mxu0 0.0
        %1922 = vmatprep.subr.mxu0 0.0
        %1923 = vmatpush1.msra.mxu0 0.0
        %1924 = vmatprep.subr.mxu0 0.0
        %1925 = vmatpush1.msra.mxu0 0.0
        %1926 = vmatprep.subr.mxu0 0.0
        %1927 = vmatpush1.msra.mxu0 0.0
        %1928 = vmatprep.subr.mxu0 0.0
        %1929 = vmatpush1.msra.mxu0 0.0
        %1930 = vmatprep.subr.mxu0 0.0
        %1931 = vmatpush1.msra.mxu0 0.0
        %1932 = vmatprep.subr.mxu0 0.0
        %1933 = vmatpush1.msra.mxu0 0.0
        %1934 = vmatprep.subr.mxu0 0.0
        %1935 = vmatpush1.msra.mxu0 0.0
        %1936 = vmatprep.subr.mxu0 0.0
        %1937 = vmatpush1.msra.mxu0 0.0
        %1938 = vmatprep.mubr.f32.mxu0 0.0
        %1939 = vmatmul.mubr.f32.gmra.mrb[0].mxu0 %v963
        %v1940 = vpop.f32.mrb[0].mxu0
        %v1941 = vadd.f32 %v960, %v1940
        %v1942 = vpop.f32.mrb[0].mxu0
        %v1943 = vadd.f32 %v960, %v1942
        %1944 = vdwg.mxu0
        %v1947 = vcombine.low %v1864, %v1866
        %v1949 = vunpack.c.l.s4 1966171168
        %v1950 = vunpack.c.0.s8 %v1949
        %v1951 = vlaneseq
        %v1952 = vshrl.u32 %v1951, 7
        %v1953 = vsub.s32 %v1950, %v1952
        %v1954 = vrot.slane %v1947, %v1953
        %v1956 = vunpack.c.l.s4 1966171168
        %v1957 = vunpack.c.0.s8 %v1956
        %v1958 = vlaneseq
        %v1959 = vshrl.u32 %v1958, 7
        %v1960 = vsub.s32 %v1957, %v1959
        %v1961 = vrot.slane %v1954, %v1960
        %1963 = vst.msk [vmem:[%s186 + $0x4] sm:$0x3] %vm1140, %v1961
        %v1966 = vcombine.low %v1941, %v1943
        %v1968 = vunpack.c.l.s4 1966171168
        %v1969 = vunpack.c.0.s8 %v1968
        %v1970 = vlaneseq
        %v1971 = vshrl.u32 %v1970, 7
        %v1972 = vsub.s32 %v1969, %v1971
        %v1973 = vrot.slane %v1966, %v1972
        %v1975 = vunpack.c.l.s4 1966171168
        %v1976 = vunpack.c.0.s8 %v1975
        %v1977 = vlaneseq
        %v1978 = vshrl.u32 %v1977, 7
        %v1979 = vsub.s32 %v1976, %v1978
        %v1980 = vrot.slane %v1973, %v1979
        %1982 = vst.msk [vmem:[%s186 + $0x6] sm:$0x3] %vm1140, %v1980
        %s1983 = sand.u32 %s96, 1
        %s1984 = scalar_lea.sflag [#allocation4], %s1983
        %s1985 = sand.u32 %s96, 1
        %s1986 = smul.addr %s1985, 8
        %s1987 = scalar_lea.vmem [#allocation5], %s1986
        // Predicated region
        $region37: #{pinn_forward.1} parent=31 // pred_check
          %p1988 = pneg %p106
        $region38: #{pinn_forward.1} parent=31 // pred_check_branch
          %1990 = sbr.rel (%p1988) target = $region40
        $region39: #{pinn_forward.1} parent=31 // pred_region
          %s1991 = smul.u32 8, %s20
          %s1993 = ssub.s32 128, 128
          %1994 = vsyncadd %s1984, %s1993
          %s1995 = smul.addr %s1991, 16
          %s1996 = scalar_lea.hbm %s3, %s1995
          %s1998 = sshll.u32 %s1987, 4
          %s1999 = int_to_ptr.vmem [resolvable:$true] %s1998
          %2001 = dma.vmem_to_hbm [thread:$0]  %s1999, 128, %s1996, %s1984
        $region40: #{pinn_forward.1} parent=31 // pred_fallthru
          _
      $region32: #{pinn_forward.1} parent=5 // pred_fallthru
        _
      %p2002 = scmp.le.s32.totalorder 2, %s15
      // Predicated region
      $region41: #{pinn_forward.1} parent=5 // pred_check
        %p2003 = pneg %p2002
      $region42: #{pinn_forward.1} parent=5 // pred_check_branch
        %2005 = sbr.rel (%p2003) target = $region44
      $region43: #{pinn_forward.1} parent=5 // pred_region
        %s2006 = ssub.s32 %s15, 2
        // Predicated region
        $region45: #{pinn_forward.1} parent=43 // pred_check
          %p2007 = pneg %p112
        $region46: #{pinn_forward.1} parent=43 // pred_check_branch
          %2009 = sbr.rel (%p2007) target = $region48
        $region47: #{pinn_forward.1} parent=43 // pred_region
          %s2010 = sand.u32 %s97, 1
          %s2011 = scalar_lea.sflag [#allocation4], %s2010
          %s2012 = sand.u32 %s97, 1
          %s2013 = smul.addr %s2012, 8
          %s2014 = scalar_lea.vmem [#allocation5], %s2013
          %2015 = dma.done %s2011, 128
        $region48: #{pinn_forward.1} parent=43 // pred_fallthru
          _
      $region44: #{pinn_forward.1} parent=5 // pred_fallthru
        _
    $region6: #{pinn_forward.1} parent=1 // loop_footer
      %s19 = sadd.s32 1, %s15
    $region7: #{pinn_forward.1} parent=1 // loop_footer_branch
      %14 = sbr.rel target = $region3
    $region8: #{pinn_forward.1} parent=1 // loop_exit
      _
    %2016 = vsyncpa [#allocation3], 1
    %s2017 = scalar_lea.sflag [#allocation3], 1
    %2018 = vsyncpa %s2017, 1
    %2019 = vsyncpa [#allocation4], 1
    %s2020 = scalar_lea.sflag [#allocation4], 1
    %2021 = vsyncpa %s2020, 1

</llo_original>
